<compile_context>
chip_gen: v7x
topology: tpu7x:2x2x1
jax: 0.10.0
libtpu: 0.0.40
codegen_flags: <defaults>
</compile_context>

<pallas_src>
import functools

import jax
import jax.numpy as jnp
from jax import lax
from jax.experimental import pallas as pl
from jax.experimental.pallas import tpu as pltpu


def _batch_hard_triplet_kernel(
    x_i_ref,    # (bi, d)   anchor features (original dtype, e.g. bf16/f32)
    x_j_ref,    # (bj, d)   "other" features
    sq_i_ref,   # (bi, 1)   f32 squared norms of anchors
    hsq_j_ref,  # (1, bj)   f32 HALF squared norms of others (padded cols = 1e30)
    t_i_ref,    # (bi, 1)   int32 anchor labels
    t_j_ref,    # (1, bj)   int32 other labels (padded cols = sentinel)
    o_ref,      # (bi, 1)   f32 per-row hinge output
    ap_ref,     # (bi, w)   f32 scratch: lane-wide running hard-positive max (gram space)
    an_ref,     # (bi, w)   f32 scratch: lane-wide running hard-negative min (gram space)
    *,
    margin,
):
    j = pl.program_id(1)

    @pl.when(j == 0)
    def _init():
        ap_ref[...] = jnp.full(ap_ref.shape, -jnp.inf, jnp.float32)
        an_ref[...] = jnp.full(an_ref.shape, jnp.inf, jnp.float32)

    # (bi, bj) gram tile: contract the last axis of both operands -> no XLU
    # transpose; MXU-native operand dtype in, f32 accumulate out.
    gram = lax.dot_general(
        x_i_ref[...], x_j_ref[...],
        dimension_numbers=(((1,), (1,)), ((), ())),
        preferred_element_type=jnp.float32,
    )

    # Gram-space value: dist^2 = ||xi||^2 + 2*v with v = 0.5*||xj||^2 - xi.xj.
    # sqrt / clamp / row-constant deferred to finalize (monotone -> commutes).
    v = hsq_j_ref[...] - gram                             # (bi, bj) f32, one sub
    same = t_i_ref[...] == t_j_ref[...]                   # (bi, bj) bool
    pos = jnp.where(same, v, -jnp.inf)
    neg = jnp.where(same, jnp.inf, v)

    # Fold the tile into lane-wide accumulators with elementwise VPU max/min
    # (static 128-lane-aligned chunks -> no per-step cross-lane reduce, no
    # masked width-1 stores).
    acc_w = ap_ref.shape[1]
    bj = v.shape[1]
    ap = ap_ref[...]
    an = an_ref[...]
    for c in range(bj // acc_w):
        sl = slice(c * acc_w, (c + 1) * acc_w)
        ap = jnp.maximum(ap, pos[:, sl])
        an = jnp.minimum(an, neg[:, sl])
    ap_ref[...] = ap
    an_ref[...] = an

    @pl.when(j == pl.num_programs(1) - 1)
    def _finalize():
        sq_i = sq_i_ref[...]                               # (bi, 1)
        # Single cross-lane reduce per anchor block, then O(bi) sqrts.
        d_ap2 = sq_i + 2.0 * jnp.max(ap_ref[...], axis=1, keepdims=True)
        d_an2 = sq_i + 2.0 * jnp.min(an_ref[...], axis=1, keepdims=True)
        d_ap = jnp.sqrt(jnp.maximum(d_ap2, 1e-12))         # clamp(min=1e-12).sqrt()
        d_an = jnp.sqrt(jnp.maximum(d_an2, 1e-12))
        # MarginRankingLoss(margin)(dist_an, dist_ap, y=1) per row, pre-mean.
        o_ref[...] = jnp.maximum(d_ap - d_an + margin, 0.0)


def _select_tiles(n_pad, d, itemsize):
    """Largest (bi, bj) whose per-step VMEM footprint fits a conservative budget."""
    budget = 12 * 1024 * 1024
    bj_opts = [b for b in (512, 256, 128) if n_pad % b == 0] or [n_pad]
    bi_all = [b for b in (512, 256, 128, 64, 32, 16, 8) if n_pad % b == 0] or [n_pad]
    # Prefer >= 2 anchor blocks so the "parallel" i axis can shard across
    # TensorCores (v7x megacore); fall back to a single block otherwise.
    bi_opts = [b for b in bi_all if n_pad // b >= 2] or bi_all
    for bj in bj_opts:
        for bi in bi_opts:
            # double-buffered x_i / x_j tiles + f32 per-tile temporaries
            cost = 2 * (bi + bj) * d * itemsize + 6 * bi * bj * 4
            if cost <= budget:
                return bi, bj
    return bi_opts[-1], bj_opts[-1]


def batch_hard_triplet_loss(inputs, targets, margin=0.3):
    """inputs: (n, d) float (f32 or bf16); targets: (n,) int labels -> scalar f32."""
    n, d = inputs.shape

    # Pad the batch axis so it tiles cleanly. Padded columns are excluded from
    # the positive max via a sentinel label and from the negative min via a huge
    # half-norm; padded rows are sliced off before the mean.
    if n <= 128:
        n_pad = -(-n // 8) * 8
    else:
        n_pad = -(-n // 128) * 128
    pad = n_pad - n

    xf = inputs.astype(jnp.float32)
    sq = jnp.sum(xf * xf, axis=1)                          # (n,) f32 squared norms
    t = targets.astype(jnp.int32)

    if pad:
        x_p = jnp.pad(inputs, ((0, pad), (0, 0)))
        sq_col = jnp.pad(sq, (0, pad)).reshape(n_pad, 1)
        hsq_row = jnp.pad(0.5 * sq, (0, pad),
                          constant_values=1e30).reshape(1, n_pad)
        pad_label = jnp.min(t) - 1                         # differs from every real label
        t_p = jnp.concatenate([t, jnp.full((pad,), pad_label, dtype=jnp.int32)])
    else:
        x_p = inputs
        sq_col = sq.reshape(n, 1)
        hsq_row = (0.5 * sq).reshape(1, n)
        t_p = t
    t_col = t_p.reshape(n_pad, 1)
    t_row = t_p.reshape(1, n_pad)

    bi, bj = _select_tiles(n_pad, d, jnp.dtype(inputs.dtype).itemsize)
    acc_w = 128 if bj % 128 == 0 else bj
    grid = (n_pad // bi, n_pad // bj)

    hinge = pl.pallas_call(
        functools.partial(_batch_hard_triplet_kernel, margin=float(margin)),
        out_shape=jax.ShapeDtypeStruct((n_pad, 1), jnp.float32),
        grid_spec=pltpu.PrefetchScalarGridSpec(
            num_scalar_prefetch=0,
            grid=grid,
            in_specs=[
                pl.BlockSpec((bi, d), lambda i, j: (i, 0)),   # x_i (anchors, resident over j)
                pl.BlockSpec((bj, d), lambda i, j: (j, 0)),   # x_j (streamed)
                pl.BlockSpec((bi, 1), lambda i, j: (i, 0)),   # ||x_i||^2 column
                pl.BlockSpec((1, bj), lambda i, j: (0, j)),   # 0.5*||x_j||^2 row
                pl.BlockSpec((bi, 1), lambda i, j: (i, 0)),   # labels column
                pl.BlockSpec((1, bj), lambda i, j: (0, j)),   # labels row
            ],
            out_specs=pl.BlockSpec((bi, 1), lambda i, j: (i, 0)),
            scratch_shapes=[
                pltpu.VMEM((bi, acc_w), jnp.float32),          # lane-wide running dist_ap stat
                pltpu.VMEM((bi, acc_w), jnp.float32),          # lane-wide running dist_an stat
            ],
        ),
        compiler_params=pltpu.CompilerParams(
            dimension_semantics=("parallel", "arbitrary"),
            vmem_limit_bytes=32 * 1024 * 1024,
        ),
    )(x_p, x_p, sq_col, hsq_row, t_col, t_row)

    return jnp.mean(hinge[:n, 0])


def _reference_loss(inputs, targets, margin=0.3):
    # Pure-JAX mirror of the PyTorch forward (same dtype handling as the kernel).
    xf = inputs.astype(jnp.float32)
    sq = jnp.sum(xf * xf, axis=1)
    gram = lax.dot_general(inputs, inputs,
                           dimension_numbers=(((1,), (1,)), ((), ())),
                           preferred_element_type=jnp.float32)
    dist = jnp.sqrt(jnp.maximum(sq[:, None] + sq[None, :] - 2.0 * gram, 1e-12))
    same = targets[:, None] == targets[None, :]
    dist_ap = jnp.max(jnp.where(same, dist, -jnp.inf), axis=1)
    dist_an = jnp.min(jnp.where(same, jnp.inf, dist), axis=1)
    return jnp.mean(jnp.maximum(dist_ap - dist_an + margin, 0.0))


if __name__ == "__main__":
    key = jax.random.PRNGKey(0)
    k1, k2, k3 = jax.random.split(key, 3)

    # Tiled case: 256 samples (32 identities x 8), 128-dim embeddings.
    n, d = 256, 128
    x = jax.random.normal(k1, (n, d), dtype=jnp.float32)
    labels = jnp.repeat(jnp.arange(n // 8, dtype=jnp.int32), 8)

    loss = batch_hard_triplet_loss(x, labels, margin=0.3)
    jax.block_until_ready(loss)
    ref = _reference_loss(x, labels, margin=0.3)
    assert jnp.allclose(loss, ref, rtol=1e-4, atol=1e-4), (loss, ref)

    # bf16 features: MXU takes bf16 operands directly, f32 accumulate + f32 math.
    x_bf16 = x.astype(jnp.bfloat16)
    loss_bf16 = batch_hard_triplet_loss(x_bf16, labels, margin=0.3)
    jax.block_until_ready(loss_bf16)
    ref_bf16 = _reference_loss(x_bf16, labels, margin=0.3)
    assert jnp.allclose(loss_bf16, ref_bf16, rtol=1e-2, atol=1e-2), (loss_bf16, ref_bf16)

    # Small-batch case (single full-array block, grid (1, 1)).
    n_s = 8
    x_s = jax.random.normal(k2, (n_s, d), dtype=jnp.float32)
    labels_s = jnp.array([0, 0, 1, 1, 2, 2, 3, 3], dtype=jnp.int32)
    loss_s = batch_hard_triplet_loss(x_s, labels_s, margin=0.3)
    jax.block_until_ready(loss_s)
    ref_s = _reference_loss(x_s, labels_s, margin=0.3)
    assert jnp.allclose(loss_s, ref_s, rtol=1e-4, atol=1e-4), (loss_s, ref_s)

    # Non-divisible batch (exercises the padding + sentinel-masking path).
    n_p = 200
    x_p = jax.random.normal(k3, (n_p, d), dtype=jnp.float32)
    labels_p = jnp.repeat(jnp.arange(n_p // 8, dtype=jnp.int32), 8)
    loss_p = batch_hard_triplet_loss(x_p, labels_p, margin=0.3)
    jax.block_until_ready(loss_p)
    ref_p = _reference_loss(x_p, labels_p, margin=0.3)
    assert jnp.allclose(loss_p, ref_p, rtol=1e-4, atol=1e-4), (loss_p, ref_p)

    print("KERNEL_OK")
</pallas_src>

<mosaic_0001>
module attributes {stable_mosaic.version = 11 : i64} {
  func.func @_batch_hard_triplet_kernel(%arg0: i32, %arg1: i32, %arg2: memref<128x128xf32, #tpu.memory_space<vmem>>, %arg3: memref<256x128xf32, #tpu.memory_space<vmem>>, %arg4: memref<128x1xf32, #tpu.memory_space<vmem>>, %arg5: memref<1x256xf32, #tpu.memory_space<vmem>>, %arg6: memref<128x1xi32, #tpu.memory_space<vmem>>, %arg7: memref<1x256xi32, #tpu.memory_space<vmem>>, %arg8: memref<128x1xf32, #tpu.memory_space<vmem>>, %arg9: memref<128x128xf32, #tpu.memory_space<vmem>>, %arg10: memref<128x128xf32, #tpu.memory_space<vmem>>) attributes {dimension_semantics = [#tpu.dimension_semantics<parallel>, #tpu.dimension_semantics<arbitrary>], iteration_bounds = array<i64: 2, 1>, scalar_prefetch = 0 : i64, scratch_operands = 2 : i64, tpu.core_type = #tpu.core_type<tc>, window_params = [{transform_indices = @transform_0, window_bounds = array<i64: 128, 128>}, {transform_indices = @transform_1, window_bounds = array<i64: 256, 128>}, {transform_indices = @transform_2, window_bounds = array<i64: 128, 1>}, {transform_indices = @transform_3, window_bounds = array<i64: 1, 256>}, {transform_indices = @transform_4, window_bounds = array<i64: 128, 1>}, {transform_indices = @transform_5, window_bounds = array<i64: 1, 256>}, {transform_indices = @transform_6, window_bounds = array<i64: 128, 1>}]} {
    %c0_i32 = arith.constant 0 : i32
    %0 = arith.cmpi eq, %arg1, %c0_i32 : i32
    %1 = arith.extui %0 : i1 to i32
    %c0_i32_0 = arith.constant 0 : i32
    %2 = arith.cmpi ne, %1, %c0_i32_0 : i32
    scf.if %2 {
      %cst_22 = arith.constant 0xFF800000 : f32
      %33 = vector.broadcast %cst_22 : f32 to vector<128x128xf32>
      %c0_23 = arith.constant 0 : index
      %c0_24 = arith.constant 0 : index
      %34 = vector.load %arg9[%c0_23, %c0_24] : memref<128x128xf32, #tpu.memory_space<vmem>>, vector<128x128xf32>
      tpu.vector_store %arg9[%c0_23, %c0_24], %33 {strides = array<i32>} : memref<128x128xf32, #tpu.memory_space<vmem>>, vector<128x128xf32>,
      %cst_25 = arith.constant 0x7F800000 : f32
      %35 = vector.broadcast %cst_25 : f32 to vector<128x128xf32>
      %c0_26 = arith.constant 0 : index
      %c0_27 = arith.constant 0 : index
      %36 = vector.load %arg10[%c0_26, %c0_27] : memref<128x128xf32, #tpu.memory_space<vmem>>, vector<128x128xf32>
      tpu.vector_store %arg10[%c0_26, %c0_27], %35 {strides = array<i32>} : memref<128x128xf32, #tpu.memory_space<vmem>>, vector<128x128xf32>,
    } else {
    }
    %c0 = arith.constant 0 : index
    %c0_1 = arith.constant 0 : index
    %3 = vector.load %arg2[%c0, %c0_1] : memref<128x128xf32, #tpu.memory_space<vmem>>, vector<128x128xf32>
    %c0_2 = arith.constant 0 : index
    %c0_3 = arith.constant 0 : index
    %4 = vector.load %arg3[%c0_2, %c0_3] : memref<256x128xf32, #tpu.memory_space<vmem>>, vector<256x128xf32>
    %cst = arith.constant dense<0.000000e+00> : vector<128x256xf32>
    %5 = tpu.matmul %3, %4, %cst {dimension_numbers = #tpu.dot_dimension_numbers<[1], [1], [0], [0], [0, 0, 1, 0], [], []>} : vector<128x128xf32>, vector<256x128xf32>, vector<128x256xf32> -> vector<128x256xf32>
    %c0_4 = arith.constant 0 : index
    %c0_5 = arith.constant 0 : index
    %6 = vector.load %arg5[%c0_4, %c0_5] : memref<1x256xf32, #tpu.memory_space<vmem>>, vector<1x256xf32>
    %7 = vector.broadcast %6 : vector<1x256xf32> to vector<128x256xf32>
    %8 = arith.subf %7, %5 : vector<128x256xf32>
    %c0_6 = arith.constant 0 : index
    %c0_7 = arith.constant 0 : index
    %9 = vector.load %arg6[%c0_6, %c0_7] : memref<128x1xi32, #tpu.memory_space<vmem>>, vector<128x1xi32>
    %c0_8 = arith.constant 0 : index
    %c0_9 = arith.constant 0 : index
    %10 = vector.load %arg7[%c0_8, %c0_9] : memref<1x256xi32, #tpu.memory_space<vmem>>, vector<1x256xi32>
    %11 = vector.broadcast %9 : vector<128x1xi32> to vector<128x256xi32>
    %12 = vector.broadcast %10 : vector<1x256xi32> to vector<128x256xi32>
    %13 = arith.cmpi eq, %11, %12 : vector<128x256xi32>
    %cst_10 = arith.constant 0xFF800000 : f32
    %14 = vector.broadcast %cst_10 : f32 to vector<128x256xf32>
    %15 = arith.select %13, %8, %14 : vector<128x256xi1>, vector<128x256xf32>
    %cst_11 = arith.constant 0x7F800000 : f32
    %16 = vector.broadcast %cst_11 : f32 to vector<128x256xf32>
    %17 = arith.select %13, %16, %8 : vector<128x256xi1>, vector<128x256xf32>
    %c0_12 = arith.constant 0 : index
    %c0_13 = arith.constant 0 : index
    %18 = vector.load %arg9[%c0_12, %c0_13] : memref<128x128xf32, #tpu.memory_space<vmem>>, vector<128x128xf32>
    %c0_14 = arith.constant 0 : index
    %c0_15 = arith.constant 0 : index
    %19 = vector.load %arg10[%c0_14, %c0_15] : memref<128x128xf32, #tpu.memory_space<vmem>>, vector<128x128xf32>
    %20 = vector.extract_strided_slice %15 {offsets = [0, 0], sizes = [128, 128], strides = [1, 1]} : vector<128x256xf32> to vector<128x128xf32>
    %21 = arith.maximumf %18, %20 : vector<128x128xf32>
    %22 = vector.extract_strided_slice %17 {offsets = [0, 0], sizes = [128, 128], strides = [1, 1]} : vector<128x256xf32> to vector<128x128xf32>
    %23 = arith.minimumf %19, %22 : vector<128x128xf32>
    %24 = vector.extract_strided_slice %15 {offsets = [0, 128], sizes = [128, 128], strides = [1, 1]} : vector<128x256xf32> to vector<128x128xf32>
    %25 = arith.maximumf %21, %24 : vector<128x128xf32>
    %26 = vector.extract_strided_slice %17 {offsets = [0, 128], sizes = [128, 128], strides = [1, 1]} : vector<128x256xf32> to vector<128x128xf32>
    %27 = arith.minimumf %23, %26 : vector<128x128xf32>
    %c0_16 = arith.constant 0 : index
    %c0_17 = arith.constant 0 : index
    %28 = vector.load %arg9[%c0_16, %c0_17] : memref<128x128xf32, #tpu.memory_space<vmem>>, vector<128x128xf32>
    tpu.vector_store %arg9[%c0_16, %c0_17], %25 {strides = array<i32>} : memref<128x128xf32, #tpu.memory_space<vmem>>, vector<128x128xf32>,
    %c0_18 = arith.constant 0 : index
    %c0_19 = arith.constant 0 : index
    %29 = vector.load %arg10[%c0_18, %c0_19] : memref<128x128xf32, #tpu.memory_space<vmem>>, vector<128x128xf32>
    tpu.vector_store %arg10[%c0_18, %c0_19], %27 {strides = array<i32>} : memref<128x128xf32, #tpu.memory_space<vmem>>, vector<128x128xf32>,
    %c0_i32_20 = arith.constant 0 : i32
    %30 = arith.cmpi eq, %arg1, %c0_i32_20 : i32
    %31 = arith.extui %30 : i1 to i32
    %c0_i32_21 = arith.constant 0 : i32
    %32 = arith.cmpi ne, %31, %c0_i32_21 : i32
    scf.if %32 {
      %c0_22 = arith.constant 0 : index
      %c0_23 = arith.constant 0 : index
      %33 = vector.load %arg4[%c0_22, %c0_23] : memref<128x1xf32, #tpu.memory_space<vmem>>, vector<128x1xf32>
      %c0_24 = arith.constant 0 : index
      %c0_25 = arith.constant 0 : index
      %34 = vector.load %arg9[%c0_24, %c0_25] : memref<128x128xf32, #tpu.memory_space<vmem>>, vector<128x128xf32>
      %cst_26 = arith.constant dense<0xFF800000> : vector<128xf32>
      %35 = vector.multi_reduction <maximumf>, %34, %cst_26 [1] : vector<128x128xf32> to vector<128xf32>
      %36 = vector.shape_cast %35 : vector<128xf32> to vector<128x1xf32>
      %cst_27 = arith.constant 2.000000e+00 : f32
      %37 = vector.broadcast %cst_27 : f32 to vector<128x1xf32>
      %38 = arith.mulf %37, %36 : vector<128x1xf32>
      %39 = arith.addf %33, %38 : vector<128x1xf32>
      %c0_28 = arith.constant 0 : index
      %c0_29 = arith.constant 0 : index
      %40 = vector.load %arg10[%c0_28, %c0_29] : memref<128x128xf32, #tpu.memory_space<vmem>>, vector<128x128xf32>
      %cst_30 = arith.constant dense<0x7F800000> : vector<128xf32>
      %41 = vector.multi_reduction <minimumf>, %40, %cst_30 [1] : vector<128x128xf32> to vector<128xf32>
      %42 = vector.shape_cast %41 : vector<128xf32> to vector<128x1xf32>
      %cst_31 = arith.constant 2.000000e+00 : f32
      %43 = vector.broadcast %cst_31 : f32 to vector<128x1xf32>
      %44 = arith.mulf %43, %42 : vector<128x1xf32>
      %45 = arith.addf %33, %44 : vector<128x1xf32>
      %cst_32 = arith.constant 9.99999996E-13 : f32
      %46 = vector.broadcast %cst_32 : f32 to vector<128x1xf32>
      %47 = arith.maximumf %39, %46 : vector<128x1xf32>
      %48 = math.sqrt %47 : vector<128x1xf32>
      %cst_33 = arith.constant 9.99999996E-13 : f32
      %49 = vector.broadcast %cst_33 : f32 to vector<128x1xf32>
      %50 = arith.maximumf %45, %49 : vector<128x1xf32>
      %51 = math.sqrt %50 : vector<128x1xf32>
      %52 = arith.subf %48, %51 : vector<128x1xf32>
      %cst_34 = arith.constant 3.000000e-01 : f32
      %53 = vector.broadcast %cst_34 : f32 to vector<128x1xf32>
      %54 = arith.addf %52, %53 : vector<128x1xf32>
      %cst_35 = arith.constant 0.000000e+00 : f32
      %55 = vector.broadcast %cst_35 : f32 to vector<128x1xf32>
      %56 = arith.maximumf %54, %55 : vector<128x1xf32>
      %c0_36 = arith.constant 0 : index
      %c0_37 = arith.constant 0 : index
      %57 = vector.load %arg8[%c0_36, %c0_37] : memref<128x1xf32, #tpu.memory_space<vmem>>, vector<128x1xf32>
      tpu.vector_store %arg8[%c0_36, %c0_37], %56 {strides = array<i32>} : memref<128x1xf32, #tpu.memory_space<vmem>>, vector<128x1xf32>,
    } else {
    }
    return
  }
  func.func @transform_0(%arg0: i32, %arg1: i32) -> (i32, i32) {
    %c0_i32 = arith.constant 0 : i32
    %c0_i32_0 = arith.constant 0 : i32
    return %arg0, %c0_i32 : i32, i32
  }
  func.func @transform_1(%arg0: i32, %arg1: i32) -> (i32, i32) {
    %c0_i32 = arith.constant 0 : i32
    %c0_i32_0 = arith.constant 0 : i32
    return %arg1, %c0_i32 : i32, i32
  }
  func.func @transform_2(%arg0: i32, %arg1: i32) -> (i32, i32) {
    %c0_i32 = arith.constant 0 : i32
    %c0_i32_0 = arith.constant 0 : i32
    return %arg0, %c0_i32 : i32, i32
  }
  func.func @transform_3(%arg0: i32, %arg1: i32) -> (i32, i32) {
    %c0_i32 = arith.constant 0 : i32
    %c0_i32_0 = arith.constant 0 : i32
    return %c0_i32, %arg1 : i32, i32
  }
  func.func @transform_4(%arg0: i32, %arg1: i32) -> (i32, i32) {
    %c0_i32 = arith.constant 0 : i32
    %c0_i32_0 = arith.constant 0 : i32
    return %arg0, %c0_i32 : i32, i32
  }
  func.func @transform_5(%arg0: i32, %arg1: i32) -> (i32, i32) {
    %c0_i32 = arith.constant 0 : i32
    %c0_i32_0 = arith.constant 0 : i32
    return %c0_i32, %arg1 : i32, i32
  }
  func.func @transform_6(%arg0: i32, %arg1: i32) -> (i32, i32) {
    %c0_i32 = arith.constant 0 : i32
    %c0_i32_0 = arith.constant 0 : i32
    return %arg0, %c0_i32 : i32, i32
  }
}

</mosaic_0001>

<llo_original>
// kernel: tpu_custom_call.1
$region0: #{tpu_custom_call.1}
  #allocation0 [shape = 'u32[]', space=smem, size = 0x4, offset = 0x4, fixed_abs, tag = 'smem constant byte address 0x4 - core index']
  #allocation1 [shape = 'u32[144,128]{1,0:T(1,128)}', space=vmem, size = 0x12000, scoped, tag = 'internal scratch']
  #allocation2 [shape = 'f32[128,128]{1,0:T(8,128)}', space=vmem, size = 0x10000, scoped, tag = 'scratch operand']
  #allocation3 [shape = 'f32[128,128]{1,0:T(8,128)}', space=vmem, size = 0x10000, scoped, tag = 'scratch operand']
  %s0 = inlined_call_operand.vmem [shape: f32[256,128], index: 0, kind: input, shape index: {}]
  %s1 = inlined_call_operand.vmem [shape: f32[256,128], index: 1, kind: input, shape index: {}]
  %s2 = inlined_call_operand.vmem [shape: f32[256,1], index: 2, kind: input, shape index: {}]
  %s3 = inlined_call_operand.vmem [shape: f32[1,256], index: 3, kind: input, shape index: {}]
  %s4 = inlined_call_operand.vmem [shape: s32[256,1], index: 4, kind: input, shape index: {}]
  %s5 = inlined_call_operand.vmem [shape: s32[1,256], index: 5, kind: input, shape index: {}]
  %s6 = inlined_call_operand.vmem [shape: f32[256,1], index: 6, kind: output, shape index: {}]
  %s7 = sld [smem:[#allocation0]]
  $region65: #{tpu_custom_call.1} parent=0
    _
  %s9 = ssub.s32 1, %s7
  %s10 = scalar_select 0, %s9, %s7
  loop: start=0, step=1, limit=4
  $region2: #{tpu_custom_call.1} parent=0 // loop_pre_header
    _
  $region3: #{tpu_custom_call.1} parent=0 // loop_header
    %s12 = sphi 0, %s16
    %p13 = scmp.ge.s32.totalorder %s12, 4
    %s19 = sphi 0, %s31
    %s20 = sphi 0, %s27
    %s21 = sphi 0, %s19
    %s22 = sphi 0, %s20
    %s23 = sphi 0, %s21
    %s24 = sphi 0, %s22
    %s34 = sphi 0, %s36
    %s37 = sphi 0, %s34
    %s38 = sphi 0, %s37
    %s54 = sphi 0, %s38
    %s60 = sphi 0, %s62
    %s63 = sphi 0, %s60
    %s64 = sphi 0, %s63
    %s80 = sphi 0, %s64
    %s86 = sphi 0, %s88
    %s89 = sphi 0, %s86
    %s90 = sphi 0, %s89
    %s106 = sphi 0, %s90
    %s112 = sphi 0, %s114
    %s115 = sphi 0, %s112
    %s116 = sphi 0, %s115
    %s132 = sphi 0, %s116
    %s138 = sphi 0, %s140
    %s141 = sphi 0, %s138
    %s142 = sphi 0, %s141
    %s158 = sphi 0, %s142
    %s164 = sphi 0, %s166
    %s167 = sphi 0, %s164
    %s168 = sphi 0, %s167
    %s184 = sphi 0, %s168
    %s190 = sphi 0, %s192
    %s193 = sphi 0, %s190
    %s194 = sphi 0, %s193
    %s210 = sphi 0, %s194
  $region4: #{tpu_custom_call.1} parent=0 // loop_header_branch
    %15 = sbr.rel (%p13) target = $region8
  $region5: #{tpu_custom_call.1} parent=0 // loop_body
    %s17 = ssub.s32 %s12, 1
    %s18 = ssub.s32 %s12, 2
    %s25 = sadd.s32 1, %s20
    %p26 = scmp.ge.s32.totalorder %s25, 1
    %s27 = scalar_select %p26, 0, %s25
    %s28 = sadd.s32 1, %s19
    %s29 = scalar_select %p26, %s28, %s19
    %p30 = scmp.ge.s32.totalorder %s29, 2
    %s31 = scalar_select %p30, 0, %s29
    %s32 = ssub.s32 %s19, %s31
    %p33 = scmp.eq.s32.totalorder %s32, 0
    %s35 = sadd.s32 %s34, 1
    %s36 = scalar_select %p33, %s34, %s35
    %p39 = pneg %p33
    %p40 = scmp.eq.s32.totalorder %s12, 1
    %p41 = por %p39, %p40
    %p42 = scmp.ne.s32.totalorder %s34, %s37
    %p43 = scmp.eq.s32.totalorder %s12, 0
    %p44 = por %p42, %p43
    %p45 = scmp.ne.s32.totalorder %s34, %s37
    %p46 = scmp.eq.s32.totalorder %s17, 1
    %p47 = por %p45, %p46
    %p48 = scmp.ne.s32.totalorder %s37, %s38
    %p49 = scmp.eq.s32.totalorder %s17, 0
    %p50 = por %p48, %p49
    %p51 = scmp.ne.s32.totalorder %s37, %s38
    %p52 = scmp.eq.s32.totalorder %s18, 1
    %p53 = por %p51, %p52
    %p55 = scmp.ne.s32.totalorder %s38, %s54
    %p56 = scmp.eq.s32.totalorder %s18, 0
    %p57 = por %p55, %p56
    %s58 = ssub.s32 %s20, %s27
    %p59 = scmp.eq.s32.totalorder %s58, 0
    %s61 = sadd.s32 %s60, 1
    %s62 = scalar_select %p59, %s60, %s61
    %p65 = pneg %p59
    %p66 = scmp.eq.s32.totalorder %s12, 1
    %p67 = por %p65, %p66
    %p68 = scmp.ne.s32.totalorder %s60, %s63
    %p69 = scmp.eq.s32.totalorder %s12, 0
    %p70 = por %p68, %p69
    %p71 = scmp.ne.s32.totalorder %s60, %s63
    %p72 = scmp.eq.s32.totalorder %s17, 1
    %p73 = por %p71, %p72
    %p74 = scmp.ne.s32.totalorder %s63, %s64
    %p75 = scmp.eq.s32.totalorder %s17, 0
    %p76 = por %p74, %p75
    %p77 = scmp.ne.s32.totalorder %s63, %s64
    %p78 = scmp.eq.s32.totalorder %s18, 1
    %p79 = por %p77, %p78
    %p81 = scmp.ne.s32.totalorder %s64, %s80
    %p82 = scmp.eq.s32.totalorder %s18, 0
    %p83 = por %p81, %p82
    %s84 = ssub.s32 %s19, %s31
    %p85 = scmp.eq.s32.totalorder %s84, 0
    %s87 = sadd.s32 %s86, 1
    %s88 = scalar_select %p85, %s86, %s87
    %p91 = pneg %p85
    %p92 = scmp.eq.s32.totalorder %s12, 1
    %p93 = por %p91, %p92
    %p94 = scmp.ne.s32.totalorder %s86, %s89
    %p95 = scmp.eq.s32.totalorder %s12, 0
    %p96 = por %p94, %p95
    %p97 = scmp.ne.s32.totalorder %s86, %s89
    %p98 = scmp.eq.s32.totalorder %s17, 1
    %p99 = por %p97, %p98
    %p100 = scmp.ne.s32.totalorder %s89, %s90
    %p101 = scmp.eq.s32.totalorder %s17, 0
    %p102 = por %p100, %p101
    %p103 = scmp.ne.s32.totalorder %s89, %s90
    %p104 = scmp.eq.s32.totalorder %s18, 1
    %p105 = por %p103, %p104
    %p107 = scmp.ne.s32.totalorder %s90, %s106
    %p108 = scmp.eq.s32.totalorder %s18, 0
    %p109 = por %p107, %p108
    %s110 = ssub.s32 %s20, %s27
    %p111 = scmp.eq.s32.totalorder %s110, 0
    %s113 = sadd.s32 %s112, 1
    %s114 = scalar_select %p111, %s112, %s113
    %p117 = pneg %p111
    %p118 = scmp.eq.s32.totalorder %s12, 1
    %p119 = por %p117, %p118
    %p120 = scmp.ne.s32.totalorder %s112, %s115
    %p121 = scmp.eq.s32.totalorder %s12, 0
    %p122 = por %p120, %p121
    %p123 = scmp.ne.s32.totalorder %s112, %s115
    %p124 = scmp.eq.s32.totalorder %s17, 1
    %p125 = por %p123, %p124
    %p126 = scmp.ne.s32.totalorder %s115, %s116
    %p127 = scmp.eq.s32.totalorder %s17, 0
    %p128 = por %p126, %p127
    %p129 = scmp.ne.s32.totalorder %s115, %s116
    %p130 = scmp.eq.s32.totalorder %s18, 1
    %p131 = por %p129, %p130
    %p133 = scmp.ne.s32.totalorder %s116, %s132
    %p134 = scmp.eq.s32.totalorder %s18, 0
    %p135 = por %p133, %p134
    %s136 = ssub.s32 %s19, %s31
    %p137 = scmp.eq.s32.totalorder %s136, 0
    %s139 = sadd.s32 %s138, 1
    %s140 = scalar_select %p137, %s138, %s139
    %p143 = pneg %p137
    %p144 = scmp.eq.s32.totalorder %s12, 1
    %p145 = por %p143, %p144
    %p146 = scmp.ne.s32.totalorder %s138, %s141
    %p147 = scmp.eq.s32.totalorder %s12, 0
    %p148 = por %p146, %p147
    %p149 = scmp.ne.s32.totalorder %s138, %s141
    %p150 = scmp.eq.s32.totalorder %s17, 1
    %p151 = por %p149, %p150
    %p152 = scmp.ne.s32.totalorder %s141, %s142
    %p153 = scmp.eq.s32.totalorder %s17, 0
    %p154 = por %p152, %p153
    %p155 = scmp.ne.s32.totalorder %s141, %s142
    %p156 = scmp.eq.s32.totalorder %s18, 1
    %p157 = por %p155, %p156
    %p159 = scmp.ne.s32.totalorder %s142, %s158
    %p160 = scmp.eq.s32.totalorder %s18, 0
    %p161 = por %p159, %p160
    %s162 = ssub.s32 %s20, %s27
    %p163 = scmp.eq.s32.totalorder %s162, 0
    %s165 = sadd.s32 %s164, 1
    %s166 = scalar_select %p163, %s164, %s165
    %p169 = pneg %p163
    %p170 = scmp.eq.s32.totalorder %s12, 1
    %p171 = por %p169, %p170
    %p172 = scmp.ne.s32.totalorder %s164, %s167
    %p173 = scmp.eq.s32.totalorder %s12, 0
    %p174 = por %p172, %p173
    %p175 = scmp.ne.s32.totalorder %s164, %s167
    %p176 = scmp.eq.s32.totalorder %s17, 1
    %p177 = por %p175, %p176
    %p178 = scmp.ne.s32.totalorder %s167, %s168
    %p179 = scmp.eq.s32.totalorder %s17, 0
    %p180 = por %p178, %p179
    %p181 = scmp.ne.s32.totalorder %s167, %s168
    %p182 = scmp.eq.s32.totalorder %s18, 1
    %p183 = por %p181, %p182
    %p185 = scmp.ne.s32.totalorder %s168, %s184
    %p186 = scmp.eq.s32.totalorder %s18, 0
    %p187 = por %p185, %p186
    %s188 = ssub.s32 %s19, %s31
    %p189 = scmp.eq.s32.totalorder %s188, 0
    %s191 = sadd.s32 %s190, 1
    %s192 = scalar_select %p189, %s190, %s191
    %p195 = pneg %p189
    %p196 = scmp.eq.s32.totalorder %s12, 1
    %p197 = por %p195, %p196
    %p198 = scmp.ne.s32.totalorder %s190, %s193
    %p199 = scmp.eq.s32.totalorder %s12, 0
    %p200 = por %p198, %p199
    %p201 = scmp.ne.s32.totalorder %s190, %s193
    %p202 = scmp.eq.s32.totalorder %s17, 1
    %p203 = por %p201, %p202
    %p204 = scmp.ne.s32.totalorder %s193, %s194
    %p205 = scmp.eq.s32.totalorder %s17, 0
    %p206 = por %p204, %p205
    %p207 = scmp.ne.s32.totalorder %s193, %s194
    %p208 = scmp.eq.s32.totalorder %s18, 1
    %p209 = por %p207, %p208
    %p211 = scmp.ne.s32.totalorder %s194, %s210
    %p212 = scmp.eq.s32.totalorder %s18, 0
    %p213 = por %p211, %p212
    %p214 = scmp.le.s32.totalorder 1, %s12
    %p215 = scmp.lt.s32.totalorder %s12, 3
    %p216 = pnand %p214, %p215
    %p217 = pneg %p216
    // Predicated region
    $region9: #{tpu_custom_call.1} parent=5 // pred_check
      _
    $region10: #{tpu_custom_call.1} parent=5 // pred_check_branch
      %219 = sbr.rel (%p216) target = $region12
    $region11: #{tpu_custom_call.1} parent=5 // pred_region
      %s220 = ssub.s32 %s12, 1
      // Predicated region
      $region13: #{tpu_custom_call.1} parent=11 // pred_check
        %p221 = pneg %p76
      $region14: #{tpu_custom_call.1} parent=11 // pred_check_branch
        %223 = sbr.rel (%p221) target = $region16
      $region15: #{tpu_custom_call.1} parent=11 // pred_region
        %s224 = smul.u32 32, %s22
        %p225 = scmp.lt.s32.totalorder %s224, 31
        %s226 = scalar_select %p225, %s224, 31
        %s227 = smul.addr %s226, 8
        %s228 = scalar_lea.vmem %s1, %s227
        %s229 = smul.u32 32, %s22
      $region16: #{tpu_custom_call.1} parent=11 // pred_fallthru
        _
      // Predicated region
      $region17: #{tpu_custom_call.1} parent=11 // pred_check
        %p230 = pneg %p128
      $region18: #{tpu_custom_call.1} parent=11 // pred_check_branch
        %232 = sbr.rel (%p230) target = $region20
      $region19: #{tpu_custom_call.1} parent=11 // pred_region
        %s233 = smul.u32 2, %s22
        %p234 = scmp.lt.s32.totalorder %s233, 1
        %s235 = scalar_select %p234, %s233, 1
        %s236 = scalar_lea.vmem %s3, %s235
        %s237 = smul.u32 2, %s22
      $region20: #{tpu_custom_call.1} parent=11 // pred_fallthru
        _
      // Predicated region
      $region21: #{tpu_custom_call.1} parent=11 // pred_check
        %p238 = pneg %p180
      $region22: #{tpu_custom_call.1} parent=11 // pred_check_branch
        %240 = sbr.rel (%p238) target = $region24
      $region23: #{tpu_custom_call.1} parent=11 // pred_region
        %s241 = smul.u32 2, %s22
        %p242 = scmp.lt.s32.totalorder %s241, 1
        %s243 = scalar_select %p242, %s241, 1
        %s244 = scalar_lea.vmem %s5, %s243
        %s245 = smul.u32 2, %s22
      $region24: #{tpu_custom_call.1} parent=11 // pred_fallthru
        _
    $region12: #{tpu_custom_call.1} parent=5 // pred_fallthru
      _
    %p246 = scmp.lt.s32.totalorder %s12, 2
    // Predicated region
    $region25: #{tpu_custom_call.1} parent=5 // pred_check
      %p247 = pneg %p246
    $region26: #{tpu_custom_call.1} parent=5 // pred_check_branch
      %249 = sbr.rel (%p247) target = $region28
    $region27: #{tpu_custom_call.1} parent=5 // pred_region
      // Predicated region
      $region29: #{tpu_custom_call.1} parent=27 // pred_check
        %p250 = pneg %p44
      $region30: #{tpu_custom_call.1} parent=27 // pred_check_branch
        %252 = sbr.rel (%p250) target = $region32
      $region31: #{tpu_custom_call.1} parent=27 // pred_region
        %s253 = smul.u32 16, %s19
        %p254 = scmp.lt.s32.totalorder %s253, 31
        %s255 = scalar_select %p254, %s253, 31
        %s256 = smul.addr %s255, 8
        %s257 = scalar_lea.vmem %s0, %s256
        %s258 = smul.u32 16, %s19
      $region32: #{tpu_custom_call.1} parent=27 // pred_fallthru
        _
      // Predicated region
      $region33: #{tpu_custom_call.1} parent=27 // pred_check
        %p259 = pneg %p96
      $region34: #{tpu_custom_call.1} parent=27 // pred_check_branch
        %261 = sbr.rel (%p259) target = $region36
      $region35: #{tpu_custom_call.1} parent=27 // pred_region
        %s262 = smul.u32 16, %s19
        %p263 = scmp.lt.s32.totalorder %s262, 31
        %s264 = scalar_select %p263, %s262, 31
        %s265 = smul.addr %s264, 8
        %s266 = scalar_lea.vmem %s2, %s265
        %s267 = smul.u32 16, %s19
      $region36: #{tpu_custom_call.1} parent=27 // pred_fallthru
        _
      // Predicated region
      $region37: #{tpu_custom_call.1} parent=27 // pred_check
        %p268 = pneg %p148
      $region38: #{tpu_custom_call.1} parent=27 // pred_check_branch
        %270 = sbr.rel (%p268) target = $region40
      $region39: #{tpu_custom_call.1} parent=27 // pred_region
        %s271 = smul.u32 16, %s19
        %p272 = scmp.lt.s32.totalorder %s271, 31
        %s273 = scalar_select %p272, %s271, 31
        %s274 = smul.addr %s273, 8
        %s275 = scalar_lea.vmem %s4, %s274
        %s276 = smul.u32 16, %s19
      $region40: #{tpu_custom_call.1} parent=27 // pred_fallthru
        _
    $region28: #{tpu_custom_call.1} parent=5 // pred_fallthru
      _
    %p277 = scmp.le.s32.totalorder 1, %s12
    %p278 = scmp.lt.s32.totalorder %s12, 3
    %p279 = pnand %p277, %p278
    %p280 = pneg %p279
    // Predicated region
    $region41: #{tpu_custom_call.1} parent=5 // pred_check
      _
    $region42: #{tpu_custom_call.1} parent=5 // pred_check_branch
      %282 = sbr.rel (%p279) target = $region44
    $region43: #{tpu_custom_call.1} parent=5 // pred_region
      %s283 = ssub.s32 %s12, 1
      %s284 = smul.u32 16, %s21
      %p285 = scmp.lt.s32.totalorder %s284, 31
      %s286 = scalar_select %p285, %s284, 31
      %s287 = smul.addr %s286, 8
      %s288 = scalar_lea.vmem %s0, %s287
      %p289 = pneg %p50
      %p290 = pneg %p47
      %s291 = smul.u32 32, %s22
      %p292 = scmp.lt.s32.totalorder %s291, 31
      %s293 = scalar_select %p292, %s291, 31
      %s294 = smul.addr %s293, 8
      %s295 = scalar_lea.vmem %s1, %s294
      %p296 = pneg %p76
      %p297 = pneg %p73
      %s298 = smul.u32 16, %s21
      %p299 = scmp.lt.s32.totalorder %s298, 31
      %s300 = scalar_select %p299, %s298, 31
      %s301 = smul.addr %s300, 8
      %s302 = scalar_lea.vmem %s2, %s301
      %p303 = pneg %p102
      %p304 = pneg %p99
      %s305 = smul.u32 2, %s22
      %p306 = scmp.lt.s32.totalorder %s305, 1
      %s307 = scalar_select %p306, %s305, 1
      %s308 = scalar_lea.vmem %s3, %s307
      %p309 = pneg %p128
      %p310 = pneg %p125
      %s311 = smul.u32 16, %s21
      %p312 = scmp.lt.s32.totalorder %s311, 31
      %s313 = scalar_select %p312, %s311, 31
      %s314 = smul.addr %s313, 8
      %s315 = scalar_lea.vmem %s4, %s314
      %p316 = pneg %p154
      %p317 = pneg %p151
      %s318 = smul.u32 2, %s22
      %p319 = scmp.lt.s32.totalorder %s318, 1
      %s320 = scalar_select %p319, %s318, 1
      %s321 = scalar_lea.vmem %s5, %s320
      %p322 = pneg %p180
      %p323 = pneg %p177
      %p324 = pneg %p206
      %p325 = pneg %p203
      %s326 = smul.u32 16, %s21
      %p327 = scmp.lt.s32.totalorder %s326, 31
      %s328 = scalar_select %p327, %s326, 31
      %s329 = smul.addr %s328, 8
      %s330 = scalar_lea.vmem %s6, %s329
      %s331 = smul.u32 16, %s21
      %p332 = scmp.lt.s32.totalorder %s331, 31
      %s333 = scalar_select %p332, %s331, 31
      %s334 = smul.addr %s333, 8
      %s335 = scalar_lea.vmem %s0, %s334
      %s336 = smul.u32 16, %s21
      %s337 = smul.u32 32, %s22
      %p338 = scmp.lt.s32.totalorder %s337, 31
      %s339 = scalar_select %p338, %s337, 31
      %s340 = smul.addr %s339, 8
      %s341 = scalar_lea.vmem %s1, %s340
      %s342 = smul.u32 32, %s22
      %s343 = smul.u32 16, %s21
      %p344 = scmp.lt.s32.totalorder %s343, 31
      %s345 = scalar_select %p344, %s343, 31
      %s346 = smul.addr %s345, 8
      %s347 = scalar_lea.vmem %s2, %s346
      %s348 = smul.u32 16, %s21
      %s349 = smul.u32 2, %s22
      %p350 = scmp.lt.s32.totalorder %s349, 1
      %s351 = scalar_select %p350, %s349, 1
      %s352 = scalar_lea.vmem %s3, %s351
      %s353 = smul.u32 2, %s22
      %s354 = smul.u32 16, %s21
      %p355 = scmp.lt.s32.totalorder %s354, 31
      %s356 = scalar_select %p355, %s354, 31
      %s357 = smul.addr %s356, 8
      %s358 = scalar_lea.vmem %s4, %s357
      %s359 = smul.u32 16, %s21
      %s360 = smul.u32 2, %s22
      %p361 = scmp.lt.s32.totalorder %s360, 1
      %s362 = scalar_select %p361, %s360, 1
      %s363 = scalar_lea.vmem %s5, %s362
      %s364 = smul.u32 2, %s22
      %s365 = smul.u32 16, %s21
      %p366 = scmp.lt.s32.totalorder %s365, 31
      %s367 = scalar_select %p366, %s365, 31
      %s368 = smul.addr %s367, 8
      %s369 = scalar_lea.vmem %s6, %s368
      %s370 = smul.u32 16, %s21
      %p371 = scmp.eq.s32.totalorder %s22, 0
      // Predicated region
      $region45: #{tpu_custom_call.1} parent=43 // pred_check
        %p372 = pneg %p371
      $region46: #{tpu_custom_call.1} parent=43 // pred_check_branch
        %374 = sbr.rel (%p372) target = $region48
      $region47: #{tpu_custom_call.1} parent=43 // pred_region
        %375 = vst [vmem:[#allocation2] sm:$0xff] -inf
        %376 = vst [vmem:[#allocation2 + $0x8] sm:$0xff] -inf
        %377 = vst [vmem:[#allocation2 + $0x10] sm:$0xff] -inf
        %378 = vst [vmem:[#allocation2 + $0x18] sm:$0xff] -inf
        %379 = vst [vmem:[#allocation2 + $0x20] sm:$0xff] -inf
        %380 = vst [vmem:[#allocation2 + $0x28] sm:$0xff] -inf
        %381 = vst [vmem:[#allocation2 + $0x30] sm:$0xff] -inf
        %382 = vst [vmem:[#allocation2 + $0x38] sm:$0xff] -inf
        %383 = vst [vmem:[#allocation2 + $0x40] sm:$0xff] -inf
        %384 = vst [vmem:[#allocation2 + $0x48] sm:$0xff] -inf
        %385 = vst [vmem:[#allocation2 + $0x50] sm:$0xff] -inf
        %386 = vst [vmem:[#allocation2 + $0x58] sm:$0xff] -inf
        %387 = vst [vmem:[#allocation2 + $0x60] sm:$0xff] -inf
        %388 = vst [vmem:[#allocation2 + $0x68] sm:$0xff] -inf
        %389 = vst [vmem:[#allocation2 + $0x70] sm:$0xff] -inf
        %390 = vst [vmem:[#allocation2 + $0x78] sm:$0xff] -inf
        %391 = vst [vmem:[#allocation3] sm:$0xff] inf
        %392 = vst [vmem:[#allocation3 + $0x8] sm:$0xff] inf
        %393 = vst [vmem:[#allocation3 + $0x10] sm:$0xff] inf
        %394 = vst [vmem:[#allocation3 + $0x18] sm:$0xff] inf
        %395 = vst [vmem:[#allocation3 + $0x20] sm:$0xff] inf
        %396 = vst [vmem:[#allocation3 + $0x28] sm:$0xff] inf
        %397 = vst [vmem:[#allocation3 + $0x30] sm:$0xff] inf
        %398 = vst [vmem:[#allocation3 + $0x38] sm:$0xff] inf
        %399 = vst [vmem:[#allocation3 + $0x40] sm:$0xff] inf
        %400 = vst [vmem:[#allocation3 + $0x48] sm:$0xff] inf
        %401 = vst [vmem:[#allocation3 + $0x50] sm:$0xff] inf
        %402 = vst [vmem:[#allocation3 + $0x58] sm:$0xff] inf
        %403 = vst [vmem:[#allocation3 + $0x60] sm:$0xff] inf
        %404 = vst [vmem:[#allocation3 + $0x68] sm:$0xff] inf
        %405 = vst [vmem:[#allocation3 + $0x70] sm:$0xff] inf
        %406 = vst [vmem:[#allocation3 + $0x78] sm:$0xff] inf
      $region48: #{tpu_custom_call.1} parent=43 // pred_fallthru
        _
      %v407 = vld [vmem:[%s335] sm:$0xff]
      %v408 = vld [vmem:[%s335 + $0x8] sm:$0xff]
      %v409 = vld [vmem:[%s335 + $0x10] sm:$0xff]
      %v410 = vld [vmem:[%s335 + $0x18] sm:$0xff]
      %v411 = vld [vmem:[%s335 + $0x20] sm:$0xff]
      %v412 = vld [vmem:[%s335 + $0x28] sm:$0xff]
      %v413 = vld [vmem:[%s335 + $0x30] sm:$0xff]
      %v414 = vld [vmem:[%s335 + $0x38] sm:$0xff]
      %v415 = vld [vmem:[%s335 + $0x40] sm:$0xff]
      %v416 = vld [vmem:[%s335 + $0x48] sm:$0xff]
      %v417 = vld [vmem:[%s335 + $0x50] sm:$0xff]
      %v418 = vld [vmem:[%s335 + $0x58] sm:$0xff]
      %v419 = vld [vmem:[%s335 + $0x60] sm:$0xff]
      %v420 = vld [vmem:[%s335 + $0x68] sm:$0xff]
      %v421 = vld [vmem:[%s335 + $0x70] sm:$0xff]
      %v422 = vld [vmem:[%s335 + $0x78] sm:$0xff]
      %v423 = vld [vmem:[%s341] sm:$0xff]
      %v424 = vld [vmem:[%s341 + $0x8] sm:$0xff]
      %v425 = vld [vmem:[%s341 + $0x10] sm:$0xff]
      %v426 = vld [vmem:[%s341 + $0x18] sm:$0xff]
      %v427 = vld [vmem:[%s341 + $0x20] sm:$0xff]
      %v428 = vld [vmem:[%s341 + $0x28] sm:$0xff]
      %v429 = vld [vmem:[%s341 + $0x30] sm:$0xff]
      %v430 = vld [vmem:[%s341 + $0x38] sm:$0xff]
      %v431 = vld [vmem:[%s341 + $0x40] sm:$0xff]
      %v432 = vld [vmem:[%s341 + $0x48] sm:$0xff]
      %v433 = vld [vmem:[%s341 + $0x50] sm:$0xff]
      %v434 = vld [vmem:[%s341 + $0x58] sm:$0xff]
      %v435 = vld [vmem:[%s341 + $0x60] sm:$0xff]
      %v436 = vld [vmem:[%s341 + $0x68] sm:$0xff]
      %v437 = vld [vmem:[%s341 + $0x70] sm:$0xff]
      %v438 = vld [vmem:[%s341 + $0x78] sm:$0xff]
      %v439 = vld [vmem:[%s341 + $0x80] sm:$0xff]
      %v440 = vld [vmem:[%s341 + $0x88] sm:$0xff]
      %v441 = vld [vmem:[%s341 + $0x90] sm:$0xff]
      %v442 = vld [vmem:[%s341 + $0x98] sm:$0xff]
      %v443 = vld [vmem:[%s341 + $0xa0] sm:$0xff]
      %v444 = vld [vmem:[%s341 + $0xa8] sm:$0xff]
      %v445 = vld [vmem:[%s341 + $0xb0] sm:$0xff]
      %v446 = vld [vmem:[%s341 + $0xb8] sm:$0xff]
      %v447 = vld [vmem:[%s341 + $0xc0] sm:$0xff]
      %v448 = vld [vmem:[%s341 + $0xc8] sm:$0xff]
      %v449 = vld [vmem:[%s341 + $0xd0] sm:$0xff]
      %v450 = vld [vmem:[%s341 + $0xd8] sm:$0xff]
      %v451 = vld [vmem:[%s341 + $0xe0] sm:$0xff]
      %v452 = vld [vmem:[%s341 + $0xe8] sm:$0xff]
      %v453 = vld [vmem:[%s341 + $0xf0] sm:$0xff]
      %v454 = vld [vmem:[%s341 + $0xf8] sm:$0xff]
      %455 = vmatprep.subr.mxu0 0.0
      %456 = vmatpush1.xpose.msra.mxu0 %v423
      %457 = vmatprep.subr.mxu0 0.0
      %458 = vmatpush1.xpose.msra.mxu0 %v424
      %459 = vmatprep.subr.mxu0 0.0
      %460 = vmatpush1.xpose.msra.mxu0 %v425
      %461 = vmatprep.subr.mxu0 0.0
      %462 = vmatpush1.xpose.msra.mxu0 %v426
      %463 = vmatprep.subr.mxu0 0.0
      %464 = vmatpush1.xpose.msra.mxu0 %v427
      %465 = vmatprep.subr.mxu0 0.0
      %466 = vmatpush1.xpose.msra.mxu0 %v428
      %467 = vmatprep.subr.mxu0 0.0
      %468 = vmatpush1.xpose.msra.mxu0 %v429
      %469 = vmatprep.subr.mxu0 0.0
      %470 = vmatpush1.xpose.msra.mxu0 %v430
      %471 = vmatprep.subr.mxu0 0.0
      %472 = vmatpush1.xpose.msra.mxu0 %v431
      %473 = vmatprep.subr.mxu0 0.0
      %474 = vmatpush1.xpose.msra.mxu0 %v432
      %475 = vmatprep.subr.mxu0 0.0
      %476 = vmatpush1.xpose.msra.mxu0 %v433
      %477 = vmatprep.subr.mxu0 0.0
      %478 = vmatpush1.xpose.msra.mxu0 %v434
      %479 = vmatprep.subr.mxu0 0.0
      %480 = vmatpush1.xpose.msra.mxu0 %v435
      %481 = vmatprep.subr.mxu0 0.0
      %482 = vmatpush1.xpose.msra.mxu0 %v436
      %483 = vmatprep.subr.mxu0 0.0
      %484 = vmatpush1.xpose.msra.mxu0 %v437
      %485 = vmatprep.subr.mxu0 0.0
      %486 = vmatpush1.xpose.msra.mxu0 %v438
      %487 = vmatprep.subr.mxu0 0.0
      %488 = vmatpush1.xpose.msra.mxu0 %v439
      %489 = vmatprep.subr.mxu0 0.0
      %490 = vmatpush1.xpose.msra.mxu0 %v440
      %491 = vmatprep.subr.mxu0 0.0
      %492 = vmatpush1.xpose.msra.mxu0 %v441
      %493 = vmatprep.subr.mxu0 0.0
      %494 = vmatpush1.xpose.msra.mxu0 %v442
      %495 = vmatprep.subr.mxu0 0.0
      %496 = vmatpush1.xpose.msra.mxu0 %v443
      %497 = vmatprep.subr.mxu0 0.0
      %498 = vmatpush1.xpose.msra.mxu0 %v444
      %499 = vmatprep.subr.mxu0 0.0
      %500 = vmatpush1.xpose.msra.mxu0 %v445
      %501 = vmatprep.subr.mxu0 0.0
      %502 = vmatpush1.xpose.msra.mxu0 %v446
      %503 = vmatprep.subr.mxu0 0.0
      %504 = vmatpush1.xpose.msra.mxu0 %v447
      %505 = vmatprep.subr.mxu0 0.0
      %506 = vmatpush1.xpose.msra.mxu0 %v448
      %507 = vmatprep.subr.mxu0 0.0
      %508 = vmatpush1.xpose.msra.mxu0 %v449
      %509 = vmatprep.subr.mxu0 0.0
      %510 = vmatpush1.xpose.msra.mxu0 %v450
      %511 = vmatprep.subr.mxu0 0.0
      %512 = vmatpush1.xpose.msra.mxu0 %v451
      %513 = vmatprep.subr.mxu0 0.0
      %514 = vmatpush1.xpose.msra.mxu0 %v452
      %515 = vmatprep.subr.mxu0 0.0
      %516 = vmatpush1.xpose.msra.mxu0 %v453
      %517 = vmatprep.subr.mxu0 0.0
      %518 = vmatpush1.xpose.msra.mxu0 %v454
      %519 = vmatprep.mubr.f32.mxu0 0.0
      %520 = vmatmul.mubr.f32.gmra.mrb[0].mxu0 %v407
      %v521 = vpop.f32.mrb[0].mxu0
      %v522 = vadd.f32 0.0, %v521
      %v523 = vpop.f32.mrb[0].mxu0
      %v524 = vadd.f32 0.0, %v523
      %525 = vmatprep.mubr.f32.mxu0 0.0
      %526 = vmatmul.mubr.f32.gmra.mrb[0].mxu0 %v408
      %v527 = vpop.f32.mrb[0].mxu0
      %v528 = vadd.f32 0.0, %v527
      %v529 = vpop.f32.mrb[0].mxu0
      %v530 = vadd.f32 0.0, %v529
      %531 = vmatprep.mubr.f32.mxu0 0.0
      %532 = vmatmul.mubr.f32.gmra.mrb[0].mxu0 %v409
      %v533 = vpop.f32.mrb[0].mxu0
      %v534 = vadd.f32 0.0, %v533
      %v535 = vpop.f32.mrb[0].mxu0
      %v536 = vadd.f32 0.0, %v535
      %537 = vmatprep.mubr.f32.mxu0 0.0
      %538 = vmatmul.mubr.f32.gmra.mrb[0].mxu0 %v410
      %v539 = vpop.f32.mrb[0].mxu0
      %v540 = vadd.f32 0.0, %v539
      %v541 = vpop.f32.mrb[0].mxu0
      %v542 = vadd.f32 0.0, %v541
      %543 = vmatprep.mubr.f32.mxu0 0.0
      %544 = vmatmul.mubr.f32.gmra.mrb[0].mxu0 %v411
      %v545 = vpop.f32.mrb[0].mxu0
      %v546 = vadd.f32 0.0, %v545
      %v547 = vpop.f32.mrb[0].mxu0
      %v548 = vadd.f32 0.0, %v547
      %549 = vmatprep.mubr.f32.mxu0 0.0
      %550 = vmatmul.mubr.f32.gmra.mrb[0].mxu0 %v412
      %v551 = vpop.f32.mrb[0].mxu0
      %v552 = vadd.f32 0.0, %v551
      %v553 = vpop.f32.mrb[0].mxu0
      %v554 = vadd.f32 0.0, %v553
      %555 = vmatprep.mubr.f32.mxu0 0.0
      %556 = vmatmul.mubr.f32.gmra.mrb[0].mxu0 %v413
      %v557 = vpop.f32.mrb[0].mxu0
      %v558 = vadd.f32 0.0, %v557
      %v559 = vpop.f32.mrb[0].mxu0
      %v560 = vadd.f32 0.0, %v559
      %561 = vmatprep.mubr.f32.mxu0 0.0
      %562 = vmatmul.mubr.f32.gmra.mrb[0].mxu0 %v414
      %v563 = vpop.f32.mrb[0].mxu0
      %v564 = vadd.f32 0.0, %v563
      %v565 = vpop.f32.mrb[0].mxu0
      %v566 = vadd.f32 0.0, %v565
      %567 = vmatprep.mubr.f32.mxu0 0.0
      %568 = vmatmul.mubr.f32.gmra.mrb[0].mxu0 %v415
      %v569 = vpop.f32.mrb[0].mxu0
      %v570 = vadd.f32 0.0, %v569
      %v571 = vpop.f32.mrb[0].mxu0
      %v572 = vadd.f32 0.0, %v571
      %573 = vmatprep.mubr.f32.mxu0 0.0
      %574 = vmatmul.mubr.f32.gmra.mrb[0].mxu0 %v416
      %v575 = vpop.f32.mrb[0].mxu0
      %v576 = vadd.f32 0.0, %v575
      %v577 = vpop.f32.mrb[0].mxu0
      %v578 = vadd.f32 0.0, %v577
      %579 = vmatprep.mubr.f32.mxu0 0.0
      %580 = vmatmul.mubr.f32.gmra.mrb[0].mxu0 %v417
      %v581 = vpop.f32.mrb[0].mxu0
      %v582 = vadd.f32 0.0, %v581
      %v583 = vpop.f32.mrb[0].mxu0
      %v584 = vadd.f32 0.0, %v583
      %585 = vmatprep.mubr.f32.mxu0 0.0
      %586 = vmatmul.mubr.f32.gmra.mrb[0].mxu0 %v418
      %v587 = vpop.f32.mrb[0].mxu0
      %v588 = vadd.f32 0.0, %v587
      %v589 = vpop.f32.mrb[0].mxu0
      %v590 = vadd.f32 0.0, %v589
      %591 = vmatprep.mubr.f32.mxu0 0.0
      %592 = vmatmul.mubr.f32.gmra.mrb[0].mxu0 %v419
      %v593 = vpop.f32.mrb[0].mxu0
      %v594 = vadd.f32 0.0, %v593
      %v595 = vpop.f32.mrb[0].mxu0
      %v596 = vadd.f32 0.0, %v595
      %597 = vmatprep.mubr.f32.mxu0 0.0
      %598 = vmatmul.mubr.f32.gmra.mrb[0].mxu0 %v420
      %v599 = vpop.f32.mrb[0].mxu0
      %v600 = vadd.f32 0.0, %v599
      %v601 = vpop.f32.mrb[0].mxu0
      %v602 = vadd.f32 0.0, %v601
      %603 = vmatprep.mubr.f32.mxu0 0.0
      %604 = vmatmul.mubr.f32.gmra.mrb[0].mxu0 %v421
      %v605 = vpop.f32.mrb[0].mxu0
      %v606 = vadd.f32 0.0, %v605
      %v607 = vpop.f32.mrb[0].mxu0
      %v608 = vadd.f32 0.0, %v607
      %609 = vmatprep.mubr.f32.mxu0 0.0
      %610 = vmatmul.mubr.f32.gmra.mrb[0].mxu0 %v422
      %v611 = vpop.f32.mrb[0].mxu0
      %v612 = vadd.f32 0.0, %v611
      %v613 = vpop.f32.mrb[0].mxu0
      %v614 = vadd.f32 0.0, %v613
      %615 = vdwg.mxu0
      %v616 = vld [vmem:[%s352] sm:$0x3]
      %v618 = vlaneseq
      %v619 = vshrl.u32 %v618, 7
      %v620 = vsub.s32 0, %v619
      %v621 = vrot.slane %v616, %v620
      %v622 = vlaneseq
      %v623 = vshrl.u32 %v622, 7
      %v624 = vsub.s32 1, %v623
      %v625 = vrot.slane %v616, %v624
      %v628 = vsub.f32 %v621, %v522
      %v629 = vsub.f32 %v625, %v524
      %v630 = vsub.f32 %v621, %v528
      %v631 = vsub.f32 %v625, %v530
      %v632 = vsub.f32 %v621, %v534
      %v633 = vsub.f32 %v625, %v536
      %v634 = vsub.f32 %v621, %v540
      %v635 = vsub.f32 %v625, %v542
      %v636 = vsub.f32 %v621, %v546
      %v637 = vsub.f32 %v625, %v548
      %v638 = vsub.f32 %v621, %v552
      %v639 = vsub.f32 %v625, %v554
      %v640 = vsub.f32 %v621, %v558
      %v641 = vsub.f32 %v625, %v560
      %v642 = vsub.f32 %v621, %v564
      %v643 = vsub.f32 %v625, %v566
      %v644 = vsub.f32 %v621, %v570
      %v645 = vsub.f32 %v625, %v572
      %v646 = vsub.f32 %v621, %v576
      %v647 = vsub.f32 %v625, %v578
      %v648 = vsub.f32 %v621, %v582
      %v649 = vsub.f32 %v625, %v584
      %v650 = vsub.f32 %v621, %v588
      %v651 = vsub.f32 %v625, %v590
      %v652 = vsub.f32 %v621, %v594
      %v653 = vsub.f32 %v625, %v596
      %v654 = vsub.f32 %v621, %v600
      %v655 = vsub.f32 %v625, %v602
      %v656 = vsub.f32 %v621, %v606
      %v657 = vsub.f32 %v625, %v608
      %v658 = vsub.f32 %v621, %v612
      %v659 = vsub.f32 %v625, %v614
      %v660 = vld [vmem:[%s358] sm:$0xff]
      %v661 = vld [vmem:[%s358 + $0x8] sm:$0xff]
      %v662 = vld [vmem:[%s358 + $0x10] sm:$0xff]
      %v663 = vld [vmem:[%s358 + $0x18] sm:$0xff]
      %v664 = vld [vmem:[%s358 + $0x20] sm:$0xff]
      %v665 = vld [vmem:[%s358 + $0x28] sm:$0xff]
      %v666 = vld [vmem:[%s358 + $0x30] sm:$0xff]
      %v667 = vld [vmem:[%s358 + $0x38] sm:$0xff]
      %v668 = vld [vmem:[%s358 + $0x40] sm:$0xff]
      %v669 = vld [vmem:[%s358 + $0x48] sm:$0xff]
      %v670 = vld [vmem:[%s358 + $0x50] sm:$0xff]
      %v671 = vld [vmem:[%s358 + $0x58] sm:$0xff]
      %v672 = vld [vmem:[%s358 + $0x60] sm:$0xff]
      %v673 = vld [vmem:[%s358 + $0x68] sm:$0xff]
      %v674 = vld [vmem:[%s358 + $0x70] sm:$0xff]
      %v675 = vld [vmem:[%s358 + $0x78] sm:$0xff]
      %v676 = vld [vmem:[%s363] sm:$0x3]
      %677 = vset.pattern.permute.xlu0 0
      %678 = vperm.xlu0 %677, %v660
      %v679 = vpop.permute.xlu0 %678
      %680 = vset.pattern.permute.xlu0 0
      %681 = vperm.xlu0 %680, %v661
      %v682 = vpop.permute.xlu0 %681
      %683 = vset.pattern.permute.xlu0 0
      %684 = vperm.xlu0 %683, %v662
      %v685 = vpop.permute.xlu0 %684
      %686 = vset.pattern.permute.xlu0 0
      %687 = vperm.xlu0 %686, %v663
      %v688 = vpop.permute.xlu0 %687
      %689 = vset.pattern.permute.xlu0 0
      %690 = vperm.xlu0 %689, %v664
      %v691 = vpop.permute.xlu0 %690
      %692 = vset.pattern.permute.xlu0 0
      %693 = vperm.xlu0 %692, %v665
      %v694 = vpop.permute.xlu0 %693
      %695 = vset.pattern.permute.xlu0 0
      %696 = vperm.xlu0 %695, %v666
      %v697 = vpop.permute.xlu0 %696
      %698 = vset.pattern.permute.xlu0 0
      %699 = vperm.xlu0 %698, %v667
      %v700 = vpop.permute.xlu0 %699
      %701 = vset.pattern.permute.xlu0 0
      %702 = vperm.xlu0 %701, %v668
      %v703 = vpop.permute.xlu0 %702
      %704 = vset.pattern.permute.xlu0 0
      %705 = vperm.xlu0 %704, %v669
      %v706 = vpop.permute.xlu0 %705
      %707 = vset.pattern.permute.xlu0 0
      %708 = vperm.xlu0 %707, %v670
      %v709 = vpop.permute.xlu0 %708
      %710 = vset.pattern.permute.xlu0 0
      %711 = vperm.xlu0 %710, %v671
      %v712 = vpop.permute.xlu0 %711
      %713 = vset.pattern.permute.xlu0 0
      %714 = vperm.xlu0 %713, %v672
      %v715 = vpop.permute.xlu0 %714
      %716 = vset.pattern.permute.xlu0 0
      %717 = vperm.xlu0 %716, %v673
      %v718 = vpop.permute.xlu0 %717
      %719 = vset.pattern.permute.xlu0 0
      %720 = vperm.xlu0 %719, %v674
      %v721 = vpop.permute.xlu0 %720
      %722 = vset.pattern.permute.xlu0 0
      %723 = vperm.xlu0 %722, %v675
      %v724 = vpop.permute.xlu0 %723
      %v725 = vlaneseq
      %v726 = vshrl.u32 %v725, 7
      %v727 = vsub.s32 0, %v726
      %v728 = vrot.slane %v676, %v727
      %v729 = vlaneseq
      %v730 = vshrl.u32 %v729, 7
      %v731 = vsub.s32 1, %v730
      %v732 = vrot.slane %v676, %v731
      %vm733 = vcmp.eq.s32.totalorder %v679, %v728
      %vm734 = vcmp.eq.s32.totalorder %v679, %v732
      %vm735 = vcmp.eq.s32.totalorder %v682, %v728
      %vm736 = vcmp.eq.s32.totalorder %v682, %v732
      %vm737 = vcmp.eq.s32.totalorder %v685, %v728
      %vm738 = vcmp.eq.s32.totalorder %v685, %v732
      %vm739 = vcmp.eq.s32.totalorder %v688, %v728
      %vm740 = vcmp.eq.s32.totalorder %v688, %v732
      %vm741 = vcmp.eq.s32.totalorder %v691, %v728
      %vm742 = vcmp.eq.s32.totalorder %v691, %v732
      %vm743 = vcmp.eq.s32.totalorder %v694, %v728
      %vm744 = vcmp.eq.s32.totalorder %v694, %v732
      %vm745 = vcmp.eq.s32.totalorder %v697, %v728
      %vm746 = vcmp.eq.s32.totalorder %v697, %v732
      %vm747 = vcmp.eq.s32.totalorder %v700, %v728
      %vm748 = vcmp.eq.s32.totalorder %v700, %v732
      %vm749 = vcmp.eq.s32.totalorder %v703, %v728
      %vm750 = vcmp.eq.s32.totalorder %v703, %v732
      %vm751 = vcmp.eq.s32.totalorder %v706, %v728
      %vm752 = vcmp.eq.s32.totalorder %v706, %v732
      %vm753 = vcmp.eq.s32.totalorder %v709, %v728
      %vm754 = vcmp.eq.s32.totalorder %v709, %v732
      %vm755 = vcmp.eq.s32.totalorder %v712, %v728
      %vm756 = vcmp.eq.s32.totalorder %v712, %v732
      %vm757 = vcmp.eq.s32.totalorder %v715, %v728
      %vm758 = vcmp.eq.s32.totalorder %v715, %v732
      %vm759 = vcmp.eq.s32.totalorder %v718, %v728
      %vm760 = vcmp.eq.s32.totalorder %v718, %v732
      %vm761 = vcmp.eq.s32.totalorder %v721, %v728
      %vm762 = vcmp.eq.s32.totalorder %v721, %v732
      %vm763 = vcmp.eq.s32.totalorder %v724, %v728
      %vm764 = vcmp.eq.s32.totalorder %v724, %v732
      %v765 = vsel %vm733, %v628, -inf
      %v766 = vsel %vm734, %v629, -inf
      %v767 = vsel %vm735, %v630, -inf
      %v768 = vsel %vm736, %v631, -inf
      %v769 = vsel %vm737, %v632, -inf
      %v770 = vsel %vm738, %v633, -inf
      %v771 = vsel %vm739, %v634, -inf
      %v772 = vsel %vm740, %v635, -inf
      %v773 = vsel %vm741, %v636, -inf
      %v774 = vsel %vm742, %v637, -inf
      %v775 = vsel %vm743, %v638, -inf
      %v776 = vsel %vm744, %v639, -inf
      %v777 = vsel %vm745, %v640, -inf
      %v778 = vsel %vm746, %v641, -inf
      %v779 = vsel %vm747, %v642, -inf
      %v780 = vsel %vm748, %v643, -inf
      %v781 = vsel %vm749, %v644, -inf
      %v782 = vsel %vm750, %v645, -inf
      %v783 = vsel %vm751, %v646, -inf
      %v784 = vsel %vm752, %v647, -inf
      %v785 = vsel %vm753, %v648, -inf
      %v786 = vsel %vm754, %v649, -inf
      %v787 = vsel %vm755, %v650, -inf
      %v788 = vsel %vm756, %v651, -inf
      %v789 = vsel %vm757, %v652, -inf
      %v790 = vsel %vm758, %v653, -inf
      %v791 = vsel %vm759, %v654, -inf
      %v792 = vsel %vm760, %v655, -inf
      %v793 = vsel %vm761, %v656, -inf
      %v794 = vsel %vm762, %v657, -inf
      %v795 = vsel %vm763, %v658, -inf
      %v796 = vsel %vm764, %v659, -inf
      %v797 = vsel %vm733, inf, %v628
      %v798 = vsel %vm734, inf, %v629
      %v799 = vsel %vm735, inf, %v630
      %v800 = vsel %vm736, inf, %v631
      %v801 = vsel %vm737, inf, %v632
      %v802 = vsel %vm738, inf, %v633
      %v803 = vsel %vm739, inf, %v634
      %v804 = vsel %vm740, inf, %v635
      %v805 = vsel %vm741, inf, %v636
      %v806 = vsel %vm742, inf, %v637
      %v807 = vsel %vm743, inf, %v638
      %v808 = vsel %vm744, inf, %v639
      %v809 = vsel %vm745, inf, %v640
      %v810 = vsel %vm746, inf, %v641
      %v811 = vsel %vm747, inf, %v642
      %v812 = vsel %vm748, inf, %v643
      %v813 = vsel %vm749, inf, %v644
      %v814 = vsel %vm750, inf, %v645
      %v815 = vsel %vm751, inf, %v646
      %v816 = vsel %vm752, inf, %v647
      %v817 = vsel %vm753, inf, %v648
      %v818 = vsel %vm754, inf, %v649
      %v819 = vsel %vm755, inf, %v650
      %v820 = vsel %vm756, inf, %v651
      %v821 = vsel %vm757, inf, %v652
      %v822 = vsel %vm758, inf, %v653
      %v823 = vsel %vm759, inf, %v654
      %v824 = vsel %vm760, inf, %v655
      %v825 = vsel %vm761, inf, %v656
      %v826 = vsel %vm762, inf, %v657
      %v827 = vsel %vm763, inf, %v658
      %v828 = vsel %vm764, inf, %v659
      %v829 = vld [vmem:[#allocation2] sm:$0xff]
      %v830 = vld [vmem:[#allocation2 + $0x8] sm:$0xff]
      %v831 = vld [vmem:[#allocation2 + $0x10] sm:$0xff]
      %v832 = vld [vmem:[#allocation2 + $0x18] sm:$0xff]
      %v833 = vld [vmem:[#allocation2 + $0x20] sm:$0xff]
      %v834 = vld [vmem:[#allocation2 + $0x28] sm:$0xff]
      %v835 = vld [vmem:[#allocation2 + $0x30] sm:$0xff]
      %v836 = vld [vmem:[#allocation2 + $0x38] sm:$0xff]
      %v837 = vld [vmem:[#allocation2 + $0x40] sm:$0xff]
      %v838 = vld [vmem:[#allocation2 + $0x48] sm:$0xff]
      %v839 = vld [vmem:[#allocation2 + $0x50] sm:$0xff]
      %v840 = vld [vmem:[#allocation2 + $0x58] sm:$0xff]
      %v841 = vld [vmem:[#allocation2 + $0x60] sm:$0xff]
      %v842 = vld [vmem:[#allocation2 + $0x68] sm:$0xff]
      %v843 = vld [vmem:[#allocation2 + $0x70] sm:$0xff]
      %v844 = vld [vmem:[#allocation2 + $0x78] sm:$0xff]
      %v845 = vld [vmem:[#allocation3] sm:$0xff]
      %v846 = vld [vmem:[#allocation3 + $0x8] sm:$0xff]
      %v847 = vld [vmem:[#allocation3 + $0x10] sm:$0xff]
      %v848 = vld [vmem:[#allocation3 + $0x18] sm:$0xff]
      %v849 = vld [vmem:[#allocation3 + $0x20] sm:$0xff]
      %v850 = vld [vmem:[#allocation3 + $0x28] sm:$0xff]
      %v851 = vld [vmem:[#allocation3 + $0x30] sm:$0xff]
      %v852 = vld [vmem:[#allocation3 + $0x38] sm:$0xff]
      %v853 = vld [vmem:[#allocation3 + $0x40] sm:$0xff]
      %v854 = vld [vmem:[#allocation3 + $0x48] sm:$0xff]
      %v855 = vld [vmem:[#allocation3 + $0x50] sm:$0xff]
      %v856 = vld [vmem:[#allocation3 + $0x58] sm:$0xff]
      %v857 = vld [vmem:[#allocation3 + $0x60] sm:$0xff]
      %v858 = vld [vmem:[#allocation3 + $0x68] sm:$0xff]
      %v859 = vld [vmem:[#allocation3 + $0x70] sm:$0xff]
      %v860 = vld [vmem:[#allocation3 + $0x78] sm:$0xff]
      %v861 = vmax.f32 %v829, %v765
      %v862 = vmax.f32 %v830, %v767
      %v863 = vmax.f32 %v831, %v769
      %v864 = vmax.f32 %v832, %v771
      %v865 = vmax.f32 %v833, %v773
      %v866 = vmax.f32 %v834, %v775
      %v867 = vmax.f32 %v835, %v777
      %v868 = vmax.f32 %v836, %v779
      %v869 = vmax.f32 %v837, %v781
      %v870 = vmax.f32 %v838, %v783
      %v871 = vmax.f32 %v839, %v785
      %v872 = vmax.f32 %v840, %v787
      %v873 = vmax.f32 %v841, %v789
      %v874 = vmax.f32 %v842, %v791
      %v875 = vmax.f32 %v843, %v793
      %v876 = vmax.f32 %v844, %v795
      %v877 = vmin.f32 %v845, %v797
      %v878 = vmin.f32 %v846, %v799
      %v879 = vmin.f32 %v847, %v801
      %v880 = vmin.f32 %v848, %v803
      %v881 = vmin.f32 %v849, %v805
      %v882 = vmin.f32 %v850, %v807
      %v883 = vmin.f32 %v851, %v809
      %v884 = vmin.f32 %v852, %v811
      %v885 = vmin.f32 %v853, %v813
      %v886 = vmin.f32 %v854, %v815
      %v887 = vmin.f32 %v855, %v817
      %v888 = vmin.f32 %v856, %v819
      %v889 = vmin.f32 %v857, %v821
      %v890 = vmin.f32 %v858, %v823
      %v891 = vmin.f32 %v859, %v825
      %v892 = vmin.f32 %v860, %v827
      %v893 = vmax.f32 %v861, %v766
      %v894 = vmax.f32 %v862, %v768
      %v895 = vmax.f32 %v863, %v770
      %v896 = vmax.f32 %v864, %v772
      %v897 = vmax.f32 %v865, %v774
      %v898 = vmax.f32 %v866, %v776
      %v899 = vmax.f32 %v867, %v778
      %v900 = vmax.f32 %v868, %v780
      %v901 = vmax.f32 %v869, %v782
      %v902 = vmax.f32 %v870, %v784
      %v903 = vmax.f32 %v871, %v786
      %v904 = vmax.f32 %v872, %v788
      %v905 = vmax.f32 %v873, %v790
      %v906 = vmax.f32 %v874, %v792
      %v907 = vmax.f32 %v875, %v794
      %v908 = vmax.f32 %v876, %v796
      %v909 = vmin.f32 %v877, %v798
      %v910 = vmin.f32 %v878, %v800
      %v911 = vmin.f32 %v879, %v802
      %v912 = vmin.f32 %v880, %v804
      %v913 = vmin.f32 %v881, %v806
      %v914 = vmin.f32 %v882, %v808
      %v915 = vmin.f32 %v883, %v810
      %v916 = vmin.f32 %v884, %v812
      %v917 = vmin.f32 %v885, %v814
      %v918 = vmin.f32 %v886, %v816
      %v919 = vmin.f32 %v887, %v818
      %v920 = vmin.f32 %v888, %v820
      %v921 = vmin.f32 %v889, %v822
      %v922 = vmin.f32 %v890, %v824
      %v923 = vmin.f32 %v891, %v826
      %v924 = vmin.f32 %v892, %v828
      %925 = vst [vmem:[#allocation2] sm:$0xff] %v893
      %926 = vst [vmem:[#allocation2 + $0x8] sm:$0xff] %v894
      %927 = vst [vmem:[#allocation2 + $0x10] sm:$0xff] %v895
      %928 = vst [vmem:[#allocation2 + $0x18] sm:$0xff] %v896
      %929 = vst [vmem:[#allocation2 + $0x20] sm:$0xff] %v897
      %930 = vst [vmem:[#allocation2 + $0x28] sm:$0xff] %v898
      %931 = vst [vmem:[#allocation2 + $0x30] sm:$0xff] %v899
      %932 = vst [vmem:[#allocation2 + $0x38] sm:$0xff] %v900
      %933 = vst [vmem:[#allocation2 + $0x40] sm:$0xff] %v901
      %934 = vst [vmem:[#allocation2 + $0x48] sm:$0xff] %v902
      %935 = vst [vmem:[#allocation2 + $0x50] sm:$0xff] %v903
      %936 = vst [vmem:[#allocation2 + $0x58] sm:$0xff] %v904
      %937 = vst [vmem:[#allocation2 + $0x60] sm:$0xff] %v905
      %938 = vst [vmem:[#allocation2 + $0x68] sm:$0xff] %v906
      %939 = vst [vmem:[#allocation2 + $0x70] sm:$0xff] %v907
      %940 = vst [vmem:[#allocation2 + $0x78] sm:$0xff] %v908
      %941 = vst [vmem:[#allocation3] sm:$0xff] %v909
      %942 = vst [vmem:[#allocation3 + $0x8] sm:$0xff] %v910
      %943 = vst [vmem:[#allocation3 + $0x10] sm:$0xff] %v911
      %944 = vst [vmem:[#allocation3 + $0x18] sm:$0xff] %v912
      %945 = vst [vmem:[#allocation3 + $0x20] sm:$0xff] %v913
      %946 = vst [vmem:[#allocation3 + $0x28] sm:$0xff] %v914
      %947 = vst [vmem:[#allocation3 + $0x30] sm:$0xff] %v915
      %948 = vst [vmem:[#allocation3 + $0x38] sm:$0xff] %v916
      %949 = vst [vmem:[#allocation3 + $0x40] sm:$0xff] %v917
      %950 = vst [vmem:[#allocation3 + $0x48] sm:$0xff] %v918
      %951 = vst [vmem:[#allocation3 + $0x50] sm:$0xff] %v919
      %952 = vst [vmem:[#allocation3 + $0x58] sm:$0xff] %v920
      %953 = vst [vmem:[#allocation3 + $0x60] sm:$0xff] %v921
      %954 = vst [vmem:[#allocation3 + $0x68] sm:$0xff] %v922
      %955 = vst [vmem:[#allocation3 + $0x70] sm:$0xff] %v923
      %956 = vst [vmem:[#allocation3 + $0x78] sm:$0xff] %v924
      // Predicated region
      $region49: #{tpu_custom_call.1} parent=43 // pred_check
        %p957 = pneg %p371
      $region50: #{tpu_custom_call.1} parent=43 // pred_check_branch
        %959 = sbr.rel (%p957) target = $region52
      $region51: #{tpu_custom_call.1} parent=43 // pred_region
        %v960 = vld [vmem:[%s347] sm:$0xff]
        %v961 = vld [vmem:[%s347 + $0x8] sm:$0xff]
        %v962 = vld [vmem:[%s347 + $0x10] sm:$0xff]
        %v963 = vld [vmem:[%s347 + $0x18] sm:$0xff]
        %v964 = vld [vmem:[%s347 + $0x20] sm:$0xff]
        %v965 = vld [vmem:[%s347 + $0x28] sm:$0xff]
        %v966 = vld [vmem:[%s347 + $0x30] sm:$0xff]
        %v967 = vld [vmem:[%s347 + $0x38] sm:$0xff]
        %v968 = vld [vmem:[%s347 + $0x40] sm:$0xff]
        %v969 = vld [vmem:[%s347 + $0x48] sm:$0xff]
        %v970 = vld [vmem:[%s347 + $0x50] sm:$0xff]
        %v971 = vld [vmem:[%s347 + $0x58] sm:$0xff]
        %v972 = vld [vmem:[%s347 + $0x60] sm:$0xff]
        %v973 = vld [vmem:[%s347 + $0x68] sm:$0xff]
        %v974 = vld [vmem:[%s347 + $0x70] sm:$0xff]
        %v975 = vld [vmem:[%s347 + $0x78] sm:$0xff]
        %v976 = vld [vmem:[#allocation2] sm:$0xff]
        %v977 = vld [vmem:[#allocation2 + $0x8] sm:$0xff]
        %v978 = vld [vmem:[#allocation2 + $0x10] sm:$0xff]
        %v979 = vld [vmem:[#allocation2 + $0x18] sm:$0xff]
        %v980 = vld [vmem:[#allocation2 + $0x20] sm:$0xff]
        %v981 = vld [vmem:[#allocation2 + $0x28] sm:$0xff]
        %v982 = vld [vmem:[#allocation2 + $0x30] sm:$0xff]
        %v983 = vld [vmem:[#allocation2 + $0x38] sm:$0xff]
        %v984 = vld [vmem:[#allocation2 + $0x40] sm:$0xff]
        %v985 = vld [vmem:[#allocation2 + $0x48] sm:$0xff]
        %v986 = vld [vmem:[#allocation2 + $0x50] sm:$0xff]
        %v987 = vld [vmem:[#allocation2 + $0x58] sm:$0xff]
        %v988 = vld [vmem:[#allocation2 + $0x60] sm:$0xff]
        %v989 = vld [vmem:[#allocation2 + $0x68] sm:$0xff]
        %v990 = vld [vmem:[#allocation2 + $0x70] sm:$0xff]
        %v991 = vld [vmem:[#allocation2 + $0x78] sm:$0xff]
        %992 = vmax.xlane.f32.xlu0 %v976
        %v993 = vpop.xlane.xlu0 %992
        %994 = vmax.xlane.f32.xlu0 %v977
        %v995 = vpop.xlane.xlu0 %994
        %996 = vmax.xlane.f32.xlu0 %v978
        %v997 = vpop.xlane.xlu0 %996
        %998 = vmax.xlane.f32.xlu0 %v979
        %v999 = vpop.xlane.xlu0 %998
        %1000 = vmax.xlane.f32.xlu0 %v980
        %v1001 = vpop.xlane.xlu0 %1000
        %1002 = vmax.xlane.f32.xlu0 %v981
        %v1003 = vpop.xlane.xlu0 %1002
        %1004 = vmax.xlane.f32.xlu0 %v982
        %v1005 = vpop.xlane.xlu0 %1004
        %1006 = vmax.xlane.f32.xlu0 %v983
        %v1007 = vpop.xlane.xlu0 %1006
        %1008 = vmax.xlane.f32.xlu0 %v984
        %v1009 = vpop.xlane.xlu0 %1008
        %1010 = vmax.xlane.f32.xlu0 %v985
        %v1011 = vpop.xlane.xlu0 %1010
        %1012 = vmax.xlane.f32.xlu0 %v986
        %v1013 = vpop.xlane.xlu0 %1012
        %1014 = vmax.xlane.f32.xlu0 %v987
        %v1015 = vpop.xlane.xlu0 %1014
        %1016 = vmax.xlane.f32.xlu0 %v988
        %v1017 = vpop.xlane.xlu0 %1016
        %1018 = vmax.xlane.f32.xlu0 %v989
        %v1019 = vpop.xlane.xlu0 %1018
        %1020 = vmax.xlane.f32.xlu0 %v990
        %v1021 = vpop.xlane.xlu0 %1020
        %1022 = vmax.xlane.f32.xlu0 %v991
        %v1023 = vpop.xlane.xlu0 %1022
        %v1024 = vmul.f32 %v993, 2.0
        %v1025 = vmul.f32 %v995, 2.0
        %v1026 = vmul.f32 %v997, 2.0
        %v1027 = vmul.f32 %v999, 2.0
        %v1028 = vmul.f32 %v1001, 2.0
        %v1029 = vmul.f32 %v1003, 2.0
        %v1030 = vmul.f32 %v1005, 2.0
        %v1031 = vmul.f32 %v1007, 2.0
        %v1032 = vmul.f32 %v1009, 2.0
        %v1033 = vmul.f32 %v1011, 2.0
        %v1034 = vmul.f32 %v1013, 2.0
        %v1035 = vmul.f32 %v1015, 2.0
        %v1036 = vmul.f32 %v1017, 2.0
        %v1037 = vmul.f32 %v1019, 2.0
        %v1038 = vmul.f32 %v1021, 2.0
        %v1039 = vmul.f32 %v1023, 2.0
        %v1040 = vadd.f32 %v960, %v1024
        %v1041 = vadd.f32 %v961, %v1025
        %v1042 = vadd.f32 %v962, %v1026
        %v1043 = vadd.f32 %v963, %v1027
        %v1044 = vadd.f32 %v964, %v1028
        %v1045 = vadd.f32 %v965, %v1029
        %v1046 = vadd.f32 %v966, %v1030
        %v1047 = vadd.f32 %v967, %v1031
        %v1048 = vadd.f32 %v968, %v1032
        %v1049 = vadd.f32 %v969, %v1033
        %v1050 = vadd.f32 %v970, %v1034
        %v1051 = vadd.f32 %v971, %v1035
        %v1052 = vadd.f32 %v972, %v1036
        %v1053 = vadd.f32 %v973, %v1037
        %v1054 = vadd.f32 %v974, %v1038
        %v1055 = vadd.f32 %v975, %v1039
        %v1056 = vld [vmem:[#allocation3] sm:$0xff]
        %v1057 = vld [vmem:[#allocation3 + $0x8] sm:$0xff]
        %v1058 = vld [vmem:[#allocation3 + $0x10] sm:$0xff]
        %v1059 = vld [vmem:[#allocation3 + $0x18] sm:$0xff]
        %v1060 = vld [vmem:[#allocation3 + $0x20] sm:$0xff]
        %v1061 = vld [vmem:[#allocation3 + $0x28] sm:$0xff]
        %v1062 = vld [vmem:[#allocation3 + $0x30] sm:$0xff]
        %v1063 = vld [vmem:[#allocation3 + $0x38] sm:$0xff]
        %v1064 = vld [vmem:[#allocation3 + $0x40] sm:$0xff]
        %v1065 = vld [vmem:[#allocation3 + $0x48] sm:$0xff]
        %v1066 = vld [vmem:[#allocation3 + $0x50] sm:$0xff]
        %v1067 = vld [vmem:[#allocation3 + $0x58] sm:$0xff]
        %v1068 = vld [vmem:[#allocation3 + $0x60] sm:$0xff]
        %v1069 = vld [vmem:[#allocation3 + $0x68] sm:$0xff]
        %v1070 = vld [vmem:[#allocation3 + $0x70] sm:$0xff]
        %v1071 = vld [vmem:[#allocation3 + $0x78] sm:$0xff]
        %1072 = vmin.xlane.f32.xlu0 %v1056
        %v1073 = vpop.xlane.xlu0 %1072
        %1074 = vmin.xlane.f32.xlu0 %v1057
        %v1075 = vpop.xlane.xlu0 %1074
        %1076 = vmin.xlane.f32.xlu0 %v1058
        %v1077 = vpop.xlane.xlu0 %1076
        %1078 = vmin.xlane.f32.xlu0 %v1059
        %v1079 = vpop.xlane.xlu0 %1078
        %1080 = vmin.xlane.f32.xlu0 %v1060
        %v1081 = vpop.xlane.xlu0 %1080
        %1082 = vmin.xlane.f32.xlu0 %v1061
        %v1083 = vpop.xlane.xlu0 %1082
        %1084 = vmin.xlane.f32.xlu0 %v1062
        %v1085 = vpop.xlane.xlu0 %1084
        %1086 = vmin.xlane.f32.xlu0 %v1063
        %v1087 = vpop.xlane.xlu0 %1086
        %1088 = vmin.xlane.f32.xlu0 %v1064
        %v1089 = vpop.xlane.xlu0 %1088
        %1090 = vmin.xlane.f32.xlu0 %v1065
        %v1091 = vpop.xlane.xlu0 %1090
        %1092 = vmin.xlane.f32.xlu0 %v1066
        %v1093 = vpop.xlane.xlu0 %1092
        %1094 = vmin.xlane.f32.xlu0 %v1067
        %v1095 = vpop.xlane.xlu0 %1094
        %1096 = vmin.xlane.f32.xlu0 %v1068
        %v1097 = vpop.xlane.xlu0 %1096
        %1098 = vmin.xlane.f32.xlu0 %v1069
        %v1099 = vpop.xlane.xlu0 %1098
        %1100 = vmin.xlane.f32.xlu0 %v1070
        %v1101 = vpop.xlane.xlu0 %1100
        %1102 = vmin.xlane.f32.xlu0 %v1071
        %v1103 = vpop.xlane.xlu0 %1102
        %v1104 = vmul.f32 %v1073, 2.0
        %v1105 = vmul.f32 %v1075, 2.0
        %v1106 = vmul.f32 %v1077, 2.0
        %v1107 = vmul.f32 %v1079, 2.0
        %v1108 = vmul.f32 %v1081, 2.0
        %v1109 = vmul.f32 %v1083, 2.0
        %v1110 = vmul.f32 %v1085, 2.0
        %v1111 = vmul.f32 %v1087, 2.0
        %v1112 = vmul.f32 %v1089, 2.0
        %v1113 = vmul.f32 %v1091, 2.0
        %v1114 = vmul.f32 %v1093, 2.0
        %v1115 = vmul.f32 %v1095, 2.0
        %v1116 = vmul.f32 %v1097, 2.0
        %v1117 = vmul.f32 %v1099, 2.0
        %v1118 = vmul.f32 %v1101, 2.0
        %v1119 = vmul.f32 %v1103, 2.0
        %v1120 = vadd.f32 %v960, %v1104
        %v1121 = vadd.f32 %v961, %v1105
        %v1122 = vadd.f32 %v962, %v1106
        %v1123 = vadd.f32 %v963, %v1107
        %v1124 = vadd.f32 %v964, %v1108
        %v1125 = vadd.f32 %v965, %v1109
        %v1126 = vadd.f32 %v966, %v1110
        %v1127 = vadd.f32 %v967, %v1111
        %v1128 = vadd.f32 %v968, %v1112
        %v1129 = vadd.f32 %v969, %v1113
        %v1130 = vadd.f32 %v970, %v1114
        %v1131 = vadd.f32 %v971, %v1115
        %v1132 = vadd.f32 %v972, %v1116
        %v1133 = vadd.f32 %v973, %v1117
        %v1134 = vadd.f32 %v974, %v1118
        %v1135 = vadd.f32 %v975, %v1119
        %v1136 = vmax.f32 %v1040, 1e-12
        %v1137 = vmax.f32 %v1041, 1e-12
        %v1138 = vmax.f32 %v1042, 1e-12
        %v1139 = vmax.f32 %v1043, 1e-12
        %v1140 = vmax.f32 %v1044, 1e-12
        %v1141 = vmax.f32 %v1045, 1e-12
        %v1142 = vmax.f32 %v1046, 1e-12
        %v1143 = vmax.f32 %v1047, 1e-12
        %v1144 = vmax.f32 %v1048, 1e-12
        %v1145 = vmax.f32 %v1049, 1e-12
        %v1146 = vmax.f32 %v1050, 1e-12
        %v1147 = vmax.f32 %v1051, 1e-12
        %v1148 = vmax.f32 %v1052, 1e-12
        %v1149 = vmax.f32 %v1053, 1e-12
        %v1150 = vmax.f32 %v1054, 1e-12
        %v1151 = vmax.f32 %v1055, 1e-12
        %v1152 = vrsqrt.pop %v1136
        %v1153 = vmul.f32 %v1136, %v1152
        %vm1154 = vcmp.eq.f32.partialorder %v1136, inf
        %v1155 = vsel %vm1154, %v1136, %v1153
        %vm1156 = vcmp.eq.f32.partialorder %v1136, 0.0
        %v1157 = vand.u32 %v1136, 2147483648
        %v1158 = vsel %vm1156, %v1157, %v1155
        %v1159 = vrsqrt.pop %v1137
        %v1160 = vmul.f32 %v1137, %v1159
        %vm1161 = vcmp.eq.f32.partialorder %v1137, inf
        %v1162 = vsel %vm1161, %v1137, %v1160
        %vm1163 = vcmp.eq.f32.partialorder %v1137, 0.0
        %v1164 = vand.u32 %v1137, 2147483648
        %v1165 = vsel %vm1163, %v1164, %v1162
        %v1166 = vrsqrt.pop %v1138
        %v1167 = vmul.f32 %v1138, %v1166
        %vm1168 = vcmp.eq.f32.partialorder %v1138, inf
        %v1169 = vsel %vm1168, %v1138, %v1167
        %vm1170 = vcmp.eq.f32.partialorder %v1138, 0.0
        %v1171 = vand.u32 %v1138, 2147483648
        %v1172 = vsel %vm1170, %v1171, %v1169
        %v1173 = vrsqrt.pop %v1139
        %v1174 = vmul.f32 %v1139, %v1173
        %vm1175 = vcmp.eq.f32.partialorder %v1139, inf
        %v1176 = vsel %vm1175, %v1139, %v1174
        %vm1177 = vcmp.eq.f32.partialorder %v1139, 0.0
        %v1178 = vand.u32 %v1139, 2147483648
        %v1179 = vsel %vm1177, %v1178, %v1176
        %v1180 = vrsqrt.pop %v1140
        %v1181 = vmul.f32 %v1140, %v1180
        %vm1182 = vcmp.eq.f32.partialorder %v1140, inf
        %v1183 = vsel %vm1182, %v1140, %v1181
        %vm1184 = vcmp.eq.f32.partialorder %v1140, 0.0
        %v1185 = vand.u32 %v1140, 2147483648
        %v1186 = vsel %vm1184, %v1185, %v1183
        %v1187 = vrsqrt.pop %v1141
        %v1188 = vmul.f32 %v1141, %v1187
        %vm1189 = vcmp.eq.f32.partialorder %v1141, inf
        %v1190 = vsel %vm1189, %v1141, %v1188
        %vm1191 = vcmp.eq.f32.partialorder %v1141, 0.0
        %v1192 = vand.u32 %v1141, 2147483648
        %v1193 = vsel %vm1191, %v1192, %v1190
        %v1194 = vrsqrt.pop %v1142
        %v1195 = vmul.f32 %v1142, %v1194
        %vm1196 = vcmp.eq.f32.partialorder %v1142, inf
        %v1197 = vsel %vm1196, %v1142, %v1195
        %vm1198 = vcmp.eq.f32.partialorder %v1142, 0.0
        %v1199 = vand.u32 %v1142, 2147483648
        %v1200 = vsel %vm1198, %v1199, %v1197
        %v1201 = vrsqrt.pop %v1143
        %v1202 = vmul.f32 %v1143, %v1201
        %vm1203 = vcmp.eq.f32.partialorder %v1143, inf
        %v1204 = vsel %vm1203, %v1143, %v1202
        %vm1205 = vcmp.eq.f32.partialorder %v1143, 0.0
        %v1206 = vand.u32 %v1143, 2147483648
        %v1207 = vsel %vm1205, %v1206, %v1204
        %v1208 = vrsqrt.pop %v1144
        %v1209 = vmul.f32 %v1144, %v1208
        %vm1210 = vcmp.eq.f32.partialorder %v1144, inf
        %v1211 = vsel %vm1210, %v1144, %v1209
        %vm1212 = vcmp.eq.f32.partialorder %v1144, 0.0
        %v1213 = vand.u32 %v1144, 2147483648
        %v1214 = vsel %vm1212, %v1213, %v1211
        %v1215 = vrsqrt.pop %v1145
        %v1216 = vmul.f32 %v1145, %v1215
        %vm1217 = vcmp.eq.f32.partialorder %v1145, inf
        %v1218 = vsel %vm1217, %v1145, %v1216
        %vm1219 = vcmp.eq.f32.partialorder %v1145, 0.0
        %v1220 = vand.u32 %v1145, 2147483648
        %v1221 = vsel %vm1219, %v1220, %v1218
        %v1222 = vrsqrt.pop %v1146
        %v1223 = vmul.f32 %v1146, %v1222
        %vm1224 = vcmp.eq.f32.partialorder %v1146, inf
        %v1225 = vsel %vm1224, %v1146, %v1223
        %vm1226 = vcmp.eq.f32.partialorder %v1146, 0.0
        %v1227 = vand.u32 %v1146, 2147483648
        %v1228 = vsel %vm1226, %v1227, %v1225
        %v1229 = vrsqrt.pop %v1147
        %v1230 = vmul.f32 %v1147, %v1229
        %vm1231 = vcmp.eq.f32.partialorder %v1147, inf
        %v1232 = vsel %vm1231, %v1147, %v1230
        %vm1233 = vcmp.eq.f32.partialorder %v1147, 0.0
        %v1234 = vand.u32 %v1147, 2147483648
        %v1235 = vsel %vm1233, %v1234, %v1232
        %v1236 = vrsqrt.pop %v1148
        %v1237 = vmul.f32 %v1148, %v1236
        %vm1238 = vcmp.eq.f32.partialorder %v1148, inf
        %v1239 = vsel %vm1238, %v1148, %v1237
        %vm1240 = vcmp.eq.f32.partialorder %v1148, 0.0
        %v1241 = vand.u32 %v1148, 2147483648
        %v1242 = vsel %vm1240, %v1241, %v1239
        %v1243 = vrsqrt.pop %v1149
        %v1244 = vmul.f32 %v1149, %v1243
        %vm1245 = vcmp.eq.f32.partialorder %v1149, inf
        %v1246 = vsel %vm1245, %v1149, %v1244
        %vm1247 = vcmp.eq.f32.partialorder %v1149, 0.0
        %v1248 = vand.u32 %v1149, 2147483648
        %v1249 = vsel %vm1247, %v1248, %v1246
        %v1250 = vrsqrt.pop %v1150
        %v1251 = vmul.f32 %v1150, %v1250
        %vm1252 = vcmp.eq.f32.partialorder %v1150, inf
        %v1253 = vsel %vm1252, %v1150, %v1251
        %vm1254 = vcmp.eq.f32.partialorder %v1150, 0.0
        %v1255 = vand.u32 %v1150, 2147483648
        %v1256 = vsel %vm1254, %v1255, %v1253
        %v1257 = vrsqrt.pop %v1151
        %v1258 = vmul.f32 %v1151, %v1257
        %vm1259 = vcmp.eq.f32.partialorder %v1151, inf
        %v1260 = vsel %vm1259, %v1151, %v1258
        %vm1261 = vcmp.eq.f32.partialorder %v1151, 0.0
        %v1262 = vand.u32 %v1151, 2147483648
        %v1263 = vsel %vm1261, %v1262, %v1260
        %v1264 = vmax.f32 %v1120, 1e-12
        %v1265 = vmax.f32 %v1121, 1e-12
        %v1266 = vmax.f32 %v1122, 1e-12
        %v1267 = vmax.f32 %v1123, 1e-12
        %v1268 = vmax.f32 %v1124, 1e-12
        %v1269 = vmax.f32 %v1125, 1e-12
        %v1270 = vmax.f32 %v1126, 1e-12
        %v1271 = vmax.f32 %v1127, 1e-12
        %v1272 = vmax.f32 %v1128, 1e-12
        %v1273 = vmax.f32 %v1129, 1e-12
        %v1274 = vmax.f32 %v1130, 1e-12
        %v1275 = vmax.f32 %v1131, 1e-12
        %v1276 = vmax.f32 %v1132, 1e-12
        %v1277 = vmax.f32 %v1133, 1e-12
        %v1278 = vmax.f32 %v1134, 1e-12
        %v1279 = vmax.f32 %v1135, 1e-12
        %v1280 = vrsqrt.pop %v1264
        %v1281 = vmul.f32 %v1264, %v1280
        %vm1282 = vcmp.eq.f32.partialorder %v1264, inf
        %v1283 = vsel %vm1282, %v1264, %v1281
        %vm1284 = vcmp.eq.f32.partialorder %v1264, 0.0
        %v1285 = vand.u32 %v1264, 2147483648
        %v1286 = vsel %vm1284, %v1285, %v1283
        %v1287 = vrsqrt.pop %v1265
        %v1288 = vmul.f32 %v1265, %v1287
        %vm1289 = vcmp.eq.f32.partialorder %v1265, inf
        %v1290 = vsel %vm1289, %v1265, %v1288
        %vm1291 = vcmp.eq.f32.partialorder %v1265, 0.0
        %v1292 = vand.u32 %v1265, 2147483648
        %v1293 = vsel %vm1291, %v1292, %v1290
        %v1294 = vrsqrt.pop %v1266
        %v1295 = vmul.f32 %v1266, %v1294
        %vm1296 = vcmp.eq.f32.partialorder %v1266, inf
        %v1297 = vsel %vm1296, %v1266, %v1295
        %vm1298 = vcmp.eq.f32.partialorder %v1266, 0.0
        %v1299 = vand.u32 %v1266, 2147483648
        %v1300 = vsel %vm1298, %v1299, %v1297
        %v1301 = vrsqrt.pop %v1267
        %v1302 = vmul.f32 %v1267, %v1301
        %vm1303 = vcmp.eq.f32.partialorder %v1267, inf
        %v1304 = vsel %vm1303, %v1267, %v1302
        %vm1305 = vcmp.eq.f32.partialorder %v1267, 0.0
        %v1306 = vand.u32 %v1267, 2147483648
        %v1307 = vsel %vm1305, %v1306, %v1304
        %v1308 = vrsqrt.pop %v1268
        %v1309 = vmul.f32 %v1268, %v1308
        %vm1310 = vcmp.eq.f32.partialorder %v1268, inf
        %v1311 = vsel %vm1310, %v1268, %v1309
        %vm1312 = vcmp.eq.f32.partialorder %v1268, 0.0
        %v1313 = vand.u32 %v1268, 2147483648
        %v1314 = vsel %vm1312, %v1313, %v1311
        %v1315 = vrsqrt.pop %v1269
        %v1316 = vmul.f32 %v1269, %v1315
        %vm1317 = vcmp.eq.f32.partialorder %v1269, inf
        %v1318 = vsel %vm1317, %v1269, %v1316
        %vm1319 = vcmp.eq.f32.partialorder %v1269, 0.0
        %v1320 = vand.u32 %v1269, 2147483648
        %v1321 = vsel %vm1319, %v1320, %v1318
        %v1322 = vrsqrt.pop %v1270
        %v1323 = vmul.f32 %v1270, %v1322
        %vm1324 = vcmp.eq.f32.partialorder %v1270, inf
        %v1325 = vsel %vm1324, %v1270, %v1323
        %vm1326 = vcmp.eq.f32.partialorder %v1270, 0.0
        %v1327 = vand.u32 %v1270, 2147483648
        %v1328 = vsel %vm1326, %v1327, %v1325
        %v1329 = vrsqrt.pop %v1271
        %v1330 = vmul.f32 %v1271, %v1329
        %vm1331 = vcmp.eq.f32.partialorder %v1271, inf
        %v1332 = vsel %vm1331, %v1271, %v1330
        %vm1333 = vcmp.eq.f32.partialorder %v1271, 0.0
        %v1334 = vand.u32 %v1271, 2147483648
        %v1335 = vsel %vm1333, %v1334, %v1332
        %v1336 = vrsqrt.pop %v1272
        %v1337 = vmul.f32 %v1272, %v1336
        %vm1338 = vcmp.eq.f32.partialorder %v1272, inf
        %v1339 = vsel %vm1338, %v1272, %v1337
        %vm1340 = vcmp.eq.f32.partialorder %v1272, 0.0
        %v1341 = vand.u32 %v1272, 2147483648
        %v1342 = vsel %vm1340, %v1341, %v1339
        %v1343 = vrsqrt.pop %v1273
        %v1344 = vmul.f32 %v1273, %v1343
        %vm1345 = vcmp.eq.f32.partialorder %v1273, inf
        %v1346 = vsel %vm1345, %v1273, %v1344
        %vm1347 = vcmp.eq.f32.partialorder %v1273, 0.0
        %v1348 = vand.u32 %v1273, 2147483648
        %v1349 = vsel %vm1347, %v1348, %v1346
        %v1350 = vrsqrt.pop %v1274
        %v1351 = vmul.f32 %v1274, %v1350
        %vm1352 = vcmp.eq.f32.partialorder %v1274, inf
        %v1353 = vsel %vm1352, %v1274, %v1351
        %vm1354 = vcmp.eq.f32.partialorder %v1274, 0.0
        %v1355 = vand.u32 %v1274, 2147483648
        %v1356 = vsel %vm1354, %v1355, %v1353
        %v1357 = vrsqrt.pop %v1275
        %v1358 = vmul.f32 %v1275, %v1357
        %vm1359 = vcmp.eq.f32.partialorder %v1275, inf
        %v1360 = vsel %vm1359, %v1275, %v1358
        %vm1361 = vcmp.eq.f32.partialorder %v1275, 0.0
        %v1362 = vand.u32 %v1275, 2147483648
        %v1363 = vsel %vm1361, %v1362, %v1360
        %v1364 = vrsqrt.pop %v1276
        %v1365 = vmul.f32 %v1276, %v1364
        %vm1366 = vcmp.eq.f32.partialorder %v1276, inf
        %v1367 = vsel %vm1366, %v1276, %v1365
        %vm1368 = vcmp.eq.f32.partialorder %v1276, 0.0
        %v1369 = vand.u32 %v1276, 2147483648
        %v1370 = vsel %vm1368, %v1369, %v1367
        %v1371 = vrsqrt.pop %v1277
        %v1372 = vmul.f32 %v1277, %v1371
        %vm1373 = vcmp.eq.f32.partialorder %v1277, inf
        %v1374 = vsel %vm1373, %v1277, %v1372
        %vm1375 = vcmp.eq.f32.partialorder %v1277, 0.0
        %v1376 = vand.u32 %v1277, 2147483648
        %v1377 = vsel %vm1375, %v1376, %v1374
        %v1378 = vrsqrt.pop %v1278
        %v1379 = vmul.f32 %v1278, %v1378
        %vm1380 = vcmp.eq.f32.partialorder %v1278, inf
        %v1381 = vsel %vm1380, %v1278, %v1379
        %vm1382 = vcmp.eq.f32.partialorder %v1278, 0.0
        %v1383 = vand.u32 %v1278, 2147483648
        %v1384 = vsel %vm1382, %v1383, %v1381
        %v1385 = vrsqrt.pop %v1279
        %v1386 = vmul.f32 %v1279, %v1385
        %vm1387 = vcmp.eq.f32.partialorder %v1279, inf
        %v1388 = vsel %vm1387, %v1279, %v1386
        %vm1389 = vcmp.eq.f32.partialorder %v1279, 0.0
        %v1390 = vand.u32 %v1279, 2147483648
        %v1391 = vsel %vm1389, %v1390, %v1388
        %v1392 = vsub.f32 %v1158, %v1286
        %v1393 = vsub.f32 %v1165, %v1293
        %v1394 = vsub.f32 %v1172, %v1300
        %v1395 = vsub.f32 %v1179, %v1307
        %v1396 = vsub.f32 %v1186, %v1314
        %v1397 = vsub.f32 %v1193, %v1321
        %v1398 = vsub.f32 %v1200, %v1328
        %v1399 = vsub.f32 %v1207, %v1335
        %v1400 = vsub.f32 %v1214, %v1342
        %v1401 = vsub.f32 %v1221, %v1349
        %v1402 = vsub.f32 %v1228, %v1356
        %v1403 = vsub.f32 %v1235, %v1363
        %v1404 = vsub.f32 %v1242, %v1370
        %v1405 = vsub.f32 %v1249, %v1377
        %v1406 = vsub.f32 %v1256, %v1384
        %v1407 = vsub.f32 %v1263, %v1391
        %v1408 = vadd.f32 %v1392, 0.3
        %v1409 = vadd.f32 %v1393, 0.3
        %v1410 = vadd.f32 %v1394, 0.3
        %v1411 = vadd.f32 %v1395, 0.3
        %v1412 = vadd.f32 %v1396, 0.3
        %v1413 = vadd.f32 %v1397, 0.3
        %v1414 = vadd.f32 %v1398, 0.3
        %v1415 = vadd.f32 %v1399, 0.3
        %v1416 = vadd.f32 %v1400, 0.3
        %v1417 = vadd.f32 %v1401, 0.3
        %v1418 = vadd.f32 %v1402, 0.3
        %v1419 = vadd.f32 %v1403, 0.3
        %v1420 = vadd.f32 %v1404, 0.3
        %v1421 = vadd.f32 %v1405, 0.3
        %v1422 = vadd.f32 %v1406, 0.3
        %v1423 = vadd.f32 %v1407, 0.3
        %v1424 = vmax.f32 %v1408, 0.0
        %v1425 = vmax.f32 %v1409, 0.0
        %v1426 = vmax.f32 %v1410, 0.0
        %v1427 = vmax.f32 %v1411, 0.0
        %v1428 = vmax.f32 %v1412, 0.0
        %v1429 = vmax.f32 %v1413, 0.0
        %v1430 = vmax.f32 %v1414, 0.0
        %v1431 = vmax.f32 %v1415, 0.0
        %v1432 = vmax.f32 %v1416, 0.0
        %v1433 = vmax.f32 %v1417, 0.0
        %v1434 = vmax.f32 %v1418, 0.0
        %v1435 = vmax.f32 %v1419, 0.0
        %v1436 = vmax.f32 %v1420, 0.0
        %v1437 = vmax.f32 %v1421, 0.0
        %v1438 = vmax.f32 %v1422, 0.0
        %v1439 = vmax.f32 %v1423, 0.0
        %vm1440 = vcmask 7168
        %1441 = vst.msk [vmem:[%s369] sm:$0xff] %vm1440, %v1424
        %1442 = vst.msk [vmem:[%s369 + $0x8] sm:$0xff] %vm1440, %v1425
        %1443 = vst.msk [vmem:[%s369 + $0x10] sm:$0xff] %vm1440, %v1426
        %1444 = vst.msk [vmem:[%s369 + $0x18] sm:$0xff] %vm1440, %v1427
        %1445 = vst.msk [vmem:[%s369 + $0x20] sm:$0xff] %vm1440, %v1428
        %1446 = vst.msk [vmem:[%s369 + $0x28] sm:$0xff] %vm1440, %v1429
        %1447 = vst.msk [vmem:[%s369 + $0x30] sm:$0xff] %vm1440, %v1430
        %1448 = vst.msk [vmem:[%s369 + $0x38] sm:$0xff] %vm1440, %v1431
        %1449 = vst.msk [vmem:[%s369 + $0x40] sm:$0xff] %vm1440, %v1432
        %1450 = vst.msk [vmem:[%s369 + $0x48] sm:$0xff] %vm1440, %v1433
        %1451 = vst.msk [vmem:[%s369 + $0x50] sm:$0xff] %vm1440, %v1434
        %1452 = vst.msk [vmem:[%s369 + $0x58] sm:$0xff] %vm1440, %v1435
        %1453 = vst.msk [vmem:[%s369 + $0x60] sm:$0xff] %vm1440, %v1436
        %1454 = vst.msk [vmem:[%s369 + $0x68] sm:$0xff] %vm1440, %v1437
        %1455 = vst.msk [vmem:[%s369 + $0x70] sm:$0xff] %vm1440, %v1438
        %1456 = vst.msk [vmem:[%s369 + $0x78] sm:$0xff] %vm1440, %v1439
      $region52: #{tpu_custom_call.1} parent=43 // pred_fallthru
        _
      %s1457 = smul.u32 16, %s21
      %p1458 = scmp.lt.s32.totalorder %s1457, 31
      %s1459 = scalar_select %p1458, %s1457, 31
      %s1460 = smul.addr %s1459, 8
      %s1461 = scalar_lea.vmem %s6, %s1460
      // Predicated region
      $region53: #{tpu_custom_call.1} parent=43 // pred_check
        %p1462 = pneg %p203
      $region54: #{tpu_custom_call.1} parent=43 // pred_check_branch
        %1464 = sbr.rel (%p1462) target = $region56
      $region55: #{tpu_custom_call.1} parent=43 // pred_region
        %s1465 = smul.u32 16, %s21
      $region56: #{tpu_custom_call.1} parent=43 // pred_fallthru
        _
    $region44: #{tpu_custom_call.1} parent=5 // pred_fallthru
      _
    %p1466 = scmp.le.s32.totalorder 2, %s12
    // Predicated region
    $region57: #{tpu_custom_call.1} parent=5 // pred_check
      %p1467 = pneg %p1466
    $region58: #{tpu_custom_call.1} parent=5 // pred_check_branch
      %1469 = sbr.rel (%p1467) target = $region60
    $region59: #{tpu_custom_call.1} parent=5 // pred_region
      %s1470 = ssub.s32 %s12, 2
      // Predicated region
      $region61: #{tpu_custom_call.1} parent=59 // pred_check
        %p1471 = pneg %p209
      $region62: #{tpu_custom_call.1} parent=59 // pred_check_branch
        %1473 = sbr.rel (%p1471) target = $region64
      $region63: #{tpu_custom_call.1} parent=59 // pred_region
        %s1474 = smul.u32 16, %s23
        %p1475 = scmp.lt.s32.totalorder %s1474, 31
        %s1476 = scalar_select %p1475, %s1474, 31
        %s1477 = smul.addr %s1476, 8
        %s1478 = scalar_lea.vmem %s6, %s1477
      $region64: #{tpu_custom_call.1} parent=59 // pred_fallthru
        _
    $region60: #{tpu_custom_call.1} parent=5 // pred_fallthru
      _
  $region6: #{tpu_custom_call.1} parent=0 // loop_footer
    %s16 = sadd.s32 1, %s12
  $region7: #{tpu_custom_call.1} parent=0 // loop_footer_branch
    %11 = sbr.rel target = $region3
  $region8: #{tpu_custom_call.1} parent=0 // loop_exit
    _

</llo_original>
